<compile_context>
chip_gen: v6e
topology: v6e:2x2x1
jax: 0.10.0
libtpu: 0.0.40
codegen_flags: <defaults>
</compile_context>

<pallas_src>
import functools

import jax
import jax.numpy as jnp
from jax.experimental import pallas as pl
from jax.experimental.pallas import tpu as pltpu

# ----------------------------- config ---------------------------------------
CFG = dict(
    hidden_size=32,
    intermediate_size=64,
    num_attention_heads=4,
    num_key_value_heads=2,
    head_dim=8,
    num_hidden_layers=4,
    num_key_value_layers=2,   # SwiftKV: layers >= this run inside the decode runner
    rope_theta=10000.0,
    rms_norm_eps=1e-6,
)
T = 8     # decode tokens in this batch
S = 16    # cached KV length per token


# --------------------------- fused decode kernel -----------------------------
def _fused_decode_kernel(
    hidden_ref, resid_ref, cos_ref, sin_ref, rotp_ref, maskg_ref,
    ln1_ref, ln2_ref, wq_ref, wo_ref, wg_ref, wu_ref, wd_ref,
    k_ref, v_ref, wnorm_ref,
    out_ref,
    h_scr, res_scr, q_scr,
    *, num_heads, num_kv_heads, head_dim, eps,
):
    layer = pl.program_id(0)
    n_layers = pl.num_programs(0)
    g = num_heads // num_kv_heads
    t = hidden_ref.shape[0]

    # Load the batch activations into resident VMEM scratch once.
    @pl.when(layer == 0)
    def _():
        h_scr[...] = hidden_ref[...].astype(jnp.float32)
        res_scr[...] = resid_ref[...].astype(jnp.float32)

    def rmsnorm(x, w):
        var = jnp.mean(x * x, axis=-1, keepdims=True)
        return x * jax.lax.rsqrt(var + eps) * w

    # ---- fused add-residual + RMSNorm #1 (f32) ----
    x1 = h_scr[...] + res_scr[...]
    hb = rmsnorm(x1, ln1_ref[0].astype(jnp.float32)).astype(jnp.bfloat16)

    # ---- per-head q projection + RoPE, written head-major into q_scr -------
    cos = cos_ref[...]                               # [T, hd]
    sin = sin_ref[...]
    half = head_dim // 2
    use_roll = (head_dim % 128 == 0)                 # XLU roll only when lane-aligned
    if use_roll:
        d_idx = jax.lax.broadcasted_iota(jnp.int32, (1, head_dim), 1)
        rh_sign = jnp.where(d_idx < half, -1.0, 1.0).astype(jnp.float32)

    # Static python loop: nh is tiny here; use lax.fori_loop(..., unroll=True)
    # for nh ~ 32 to bound live ranges / code size.
    for h in range(num_heads):
        q_h = jnp.dot(hb, wq_ref[0, h],
                      preferred_element_type=jnp.float32)            # [T, hd]
        if use_roll:
            # rotate_half via XLU lane rotation (zero extra weight bytes/MXU).
            q_rh = pltpu.roll(q_h, half, axis=1) * rh_sign
        else:
            # head_dim below the 128-lane tile: tiny signed-permutation matmul.
            q_rh = jnp.dot(q_h.astype(jnp.bfloat16), rotp_ref[...],
                           preferred_element_type=jnp.float32)
        q_scr[h * t:(h + 1) * t, :] = q_h * cos + q_rh * sin          # lane-dense

    # ---- GQA attention: one score dot + one PV dot per KV head -------------
    mask = maskg_ref[...]                            # [g*T, T*S] additive f32
    h_attn = jnp.zeros_like(x1)                      # [T, H] f32 accumulator
    for kvh in range(num_kv_heads):                  # static, tiny
        q_g = q_scr[kvh * g * t:(kvh + 1) * g * t, :].astype(jnp.bfloat16)
        sc = jnp.dot(q_g, k_ref[0, kvh],
                     preferred_element_type=jnp.float32) + mask       # [g*T, T*S]
        m = jnp.max(sc, axis=-1, keepdims=True)
        e = jnp.exp(sc - m)
        denom = jnp.maximum(jnp.sum(e, axis=-1, keepdims=True), 1e-30)
        p = (e * pl.reciprocal(denom, approx=True)).astype(jnp.bfloat16)
        pv = jnp.dot(p, v_ref[0, kvh],
                     preferred_element_type=jnp.float32)              # [g*T, hd]
        # o-projection accumulated per head straight from the PV rows.
        for hg in range(g):
            h_idx = kvh * g + hg
            h_attn = h_attn + jnp.dot(
                pv[hg * t:(hg + 1) * t, :].astype(jnp.bfloat16),
                wo_ref[0, h_idx], preferred_element_type=jnp.float32)  # [T, H]

    # ---- fused add-residual + RMSNorm #2 ----
    x2 = h_attn + x1
    xb = rmsnorm(x2, ln2_ref[0].astype(jnp.float32)).astype(jnp.bfloat16)

    # ---- SwiGLU MLP ----
    gate = jnp.dot(xb, wg_ref[0], preferred_element_type=jnp.float32)
    up = jnp.dot(xb, wu_ref[0], preferred_element_type=jnp.float32)
    act = (gate * jax.nn.sigmoid(gate) * up).astype(jnp.bfloat16)
    h_new = jnp.dot(act, wd_ref[0], preferred_element_type=jnp.float32)

    # carry activations to the next layer (grid step)
    h_scr[...] = h_new
    res_scr[...] = x2

    # final model norm on the last decode layer
    @pl.when(layer == n_layers - 1)
    def _():
        out_ref[...] = rmsnorm(
            h_new + x2, wnorm_ref[...].astype(jnp.float32)).astype(out_ref.dtype)


# ------------------- one-time host-side packing (hoisted) --------------------
def pack_decode_weights(params, cfg):
    """One-time packing of decode-layer weights into the kernel layout.
    NOT part of the per-forward path (perf review: hoist all re-layouts)."""
    h = cfg['hidden_size']
    nh = cfg['num_attention_heads']
    hd = cfg['head_dim']
    lp = params['layers']
    n_dec = len(lp)
    scale = hd ** -0.5

    ln1 = jnp.stack([p['input_layernorm'] for p in lp]).reshape(n_dec, 1, h)
    ln2 = jnp.stack([p['post_attention_layernorm'] for p in lp]).reshape(n_dec, 1, h)
    # attention scale folded into Wq (pre-rotation == post-rotation scaling).
    wq = (jnp.stack([p['wq_t'] for p in lp]) * scale).reshape(n_dec, h, nh, hd)
    wq_b = jnp.transpose(wq, (0, 2, 1, 3)).astype(jnp.bfloat16)        # [L, nh, H, hd]
    wo_b = jnp.stack([p['wo_t'] for p in lp]).reshape(
        n_dec, nh, hd, h).astype(jnp.bfloat16)                         # [L, nh, hd, H]
    wg_b = jnp.stack([p['wg_t'] for p in lp]).astype(jnp.bfloat16)     # [L, H, I]
    wu_b = jnp.stack([p['wu_t'] for p in lp]).astype(jnp.bfloat16)
    wd_b = jnp.stack([p['wd_t'] for p in lp]).astype(jnp.bfloat16)     # [L, I, H]
    wnorm = params['norm'].reshape(1, h).astype(jnp.float32)

    # Signed permutation implementing rotate_half (used only when head_dim is
    # not a 128-lane multiple; otherwise the kernel uses pltpu.roll).
    half = hd // 2
    eye = jnp.eye(half, dtype=jnp.float32)
    rot_p = jnp.zeros((hd, hd), jnp.float32)
    rot_p = rot_p.at[half:, :half].set(-eye).at[:half, half:].set(eye)
    rot_p = rot_p.astype(jnp.bfloat16)

    # TODO(synk): quantize wq/wo/wg/wu/wd here at real Llama dims
    # (int8 on v5e/v6e, fp8 on v7x) to halve the dominant weight-HBM term.
    return dict(ln1=ln1, ln2=ln2, wq=wq_b, wo=wo_b, wg=wg_b, wu=wu_b, wd=wd_b,
                wnorm=wnorm, rot_p=rot_p)


def pack_kv_cache(keys, values, cfg, t, s):
    """Re-layout per-token KV into the kernel layout:
       K -> [L, nkv, hd, T*S], V -> [L, nkv, T*S, hd] (bf16).
    In a real deployment the paged KV cache is kept persistently in this
    layout (or gathered in-kernel); this helper runs once per step, outside
    the kernel's hot path."""
    nkv = cfg['num_key_value_heads']
    hd = cfg['head_dim']
    decode_layers = list(range(cfg['num_key_value_layers'],
                               cfg['num_hidden_layers']))
    n_dec = len(decode_layers)
    k_stack = jnp.stack([keys[l] for l in decode_layers])      # [L, T, nkv, S, hd]
    v_stack = jnp.stack([values[l] for l in decode_layers])
    k_lin = jnp.transpose(k_stack, (0, 2, 4, 1, 3)).reshape(
        n_dec, nkv, hd, t * s).astype(jnp.bfloat16)
    v_lin = jnp.transpose(v_stack, (0, 2, 1, 3, 4)).reshape(
        n_dec, nkv, t * s, hd).astype(jnp.bfloat16)
    return k_lin, v_lin


def build_rope_and_mask(positions, cfg, t, s, kv_lens=None):
    """cos/sin as [T, head_dim] (broadcast per-head inside the kernel) and the
    block-diagonal additive attention mask tiled for the GQA group."""
    hd = cfg['head_dim']
    g = cfg['num_attention_heads'] // cfg['num_key_value_heads']
    inv_freq = 1.0 / (cfg['rope_theta'] **
                      (jnp.arange(0, hd, 2, dtype=jnp.float32) / hd))
    freqs = positions.astype(jnp.float32)[:, None] * inv_freq[None, :]
    cos = jnp.concatenate([jnp.cos(freqs), jnp.cos(freqs)], axis=-1)   # [T, hd]
    sin = jnp.concatenate([jnp.sin(freqs), jnp.sin(freqs)], axis=-1)

    if kv_lens is None:
        kv_lens = jnp.full((t,), s, dtype=jnp.int32)
    row_t = jnp.arange(t)
    col_t = jnp.arange(t * s) // s
    col_s = jnp.arange(t * s) % s
    valid = (row_t[:, None] == col_t[None, :]) & \
            (col_s[None, :] < kv_lens[col_t][None, :])
    mask = jnp.where(valid, 0.0, -1e30).astype(jnp.float32)            # [T, T*S]
    mask_g = jnp.tile(mask, (g, 1))                                    # [g*T, T*S]
    return cos, sin, mask_g


# ------------------------------ forward ---------------------------------------
def llama_swiftkv_decode_runner_forward(hidden_states, residual, cos, sin,
                                        mask_g, k_lin, v_lin, weights, cfg,
                                        weight_buffers=None):
    """Mirrors LlamaSwiftKVDecodeRunner.forward with one fused Pallas kernel.
    All weight/KV/rope/mask packing is pre-done (see pack_* helpers)."""
    h = cfg['hidden_size']
    nh = cfg['num_attention_heads']
    nkv = cfg['num_key_value_heads']
    hd = cfg['head_dim']
    g = nh // nkv
    eps = cfg['rms_norm_eps']
    t = hidden_states.shape[0]
    n_dec = k_lin.shape[0]
    ts = k_lin.shape[-1]

    def fixed(shape):
        nd = len(shape)
        return pl.BlockSpec(shape, lambda l, _z=(0,) * nd: _z)

    def per_layer(shape):
        nd = len(shape)
        kwargs = {}
        if weight_buffers is not None:
            # e.g. pl.Buffered(3) on v5e to hide the exposed layer-(l+1) weight DMA.
            kwargs['pipeline_mode'] = pl.Buffered(weight_buffers)
        return pl.BlockSpec((1,) + tuple(shape[1:]),
                            lambda l, _z=(0,) * (nd - 1): (l,) + _z, **kwargs)

    in_specs = [
        fixed((t, h)), fixed((t, h)),                  # hidden, residual
        fixed((t, hd)), fixed((t, hd)),                # cos, sin  ([T, head_dim])
        fixed((hd, hd)),                               # rotate-half permutation
        fixed((g * t, ts)),                            # grouped attention mask
        per_layer(weights['ln1'].shape), per_layer(weights['ln2'].shape),
        per_layer(weights['wq'].shape), per_layer(weights['wo'].shape),
        per_layer(weights['wg'].shape), per_layer(weights['wu'].shape),
        per_layer(weights['wd'].shape),
        per_layer(k_lin.shape), per_layer(v_lin.shape),
        fixed((1, h)),                                 # final norm weight
    ]

    kernel = functools.partial(_fused_decode_kernel, num_heads=nh,
                               num_kv_heads=nkv, head_dim=hd, eps=eps)
    out = pl.pallas_call(
        kernel,
        grid=(n_dec,),
        in_specs=in_specs,
        out_specs=fixed((t, h)),
        out_shape=jax.ShapeDtypeStruct((t, h), hidden_states.dtype),
        scratch_shapes=[pltpu.VMEM((t, h), jnp.float32),         # hidden carry
                        pltpu.VMEM((t, h), jnp.float32),         # residual carry
                        pltpu.VMEM((nh * t, hd), jnp.float32)],  # head-major q
        compiler_params=pltpu.CompilerParams(
            dimension_semantics=("arbitrary",),
            # Explicit VMEM budget with headroom (review: v7x has 64 MiB total).
            vmem_limit_bytes=32 * 1024 * 1024),
    )(hidden_states, residual, cos, sin, weights['rot_p'], mask_g,
      weights['ln1'], weights['ln2'], weights['wq'], weights['wo'],
      weights['wg'], weights['wu'], weights['wd'], k_lin, v_lin,
      weights['wnorm'])
    return out


# ------------------------------ params / main ---------------------------------
def init_params(key, cfg):
    h = cfg['hidden_size']
    inter = cfg['intermediate_size']
    nh, hd = cfg['num_attention_heads'], cfg['head_dim']
    n_decode = cfg['num_hidden_layers'] - cfg['num_key_value_layers']
    layers = []
    for _ in range(n_decode):
        key, kq, ko, kg, ku, kd, kn1, kn2 = jax.random.split(key, 8)
        layers.append(dict(
            input_layernorm=1.0 + 0.1 * jax.random.normal(kn1, (h,), jnp.float32),
            post_attention_layernorm=1.0 + 0.1 * jax.random.normal(kn2, (h,), jnp.float32),
            wq_t=0.05 * jax.random.normal(kq, (h, nh * hd), jnp.float32),
            wo_t=0.05 * jax.random.normal(ko, (nh * hd, h), jnp.float32),
            wg_t=0.05 * jax.random.normal(kg, (h, inter), jnp.float32),
            wu_t=0.05 * jax.random.normal(ku, (h, inter), jnp.float32),
            wd_t=0.05 * jax.random.normal(kd, (inter, h), jnp.float32),
        ))
    key, kn = jax.random.split(key)
    norm = 1.0 + 0.1 * jax.random.normal(kn, (h,), jnp.float32)
    return dict(layers=layers, norm=norm)


if __name__ == "__main__":
    key = jax.random.PRNGKey(0)
    k_params, k_h, k_r, k_kv = jax.random.split(key, 4)
    params = init_params(k_params, CFG)

    hidden_states = 0.1 * jax.random.normal(k_h, (T, CFG['hidden_size']), jnp.float32)
    residual = 0.1 * jax.random.normal(k_r, (T, CFG['hidden_size']), jnp.float32)
    positions = jnp.arange(S, S + T, dtype=jnp.int32)

    keys, values = {}, {}
    kv_shape = (T, CFG['num_key_value_heads'], S, CFG['head_dim'])
    kk = k_kv
    for layer in range(CFG['num_key_value_layers'], CFG['num_hidden_layers']):
        kk, ka, kb = jax.random.split(kk, 3)
        keys[layer] = 0.1 * jax.random.normal(ka, kv_shape, jnp.float32)
        values[layer] = 0.1 * jax.random.normal(kb, kv_shape, jnp.float32)

    # --- one-time packing, hoisted out of the per-step decode path ---
    weights = pack_decode_weights(params, CFG)
    k_lin, v_lin = pack_kv_cache(keys, values, CFG, T, S)
    cos, sin, mask_g = build_rope_and_mask(positions, CFG, T, S)

    out = llama_swiftkv_decode_runner_forward(
        hidden_states, residual, cos, sin, mask_g, k_lin, v_lin, weights, CFG)
    out = jax.block_until_ready(out)
    assert out.shape == (T, CFG['hidden_size'])
    assert bool(jnp.isfinite(out).all())
    print("KERNEL_OK")
</pallas_src>

<mosaic_0001>
module attributes {stable_mosaic.version = 11 : i64} {
  func.func @_fused_decode_kernel(%arg0: i32, %arg1: memref<8x32xf32, #tpu.memory_space<vmem>>, %arg2: memref<8x32xf32, #tpu.memory_space<vmem>>, %arg3: memref<8x8xf32, #tpu.memory_space<vmem>>, %arg4: memref<8x8xf32, #tpu.memory_space<vmem>>, %arg5: memref<8x8xbf16, #tpu.memory_space<vmem>>, %arg6: memref<16x128xf32, #tpu.memory_space<vmem>>, %arg7: memref<1x1x32xf32, #tpu.memory_space<vmem>>, %arg8: memref<1x1x32xf32, #tpu.memory_space<vmem>>, %arg9: memref<1x4x32x8xbf16, #tpu.memory_space<vmem>>, %arg10: memref<1x4x8x32xbf16, #tpu.memory_space<vmem>>, %arg11: memref<1x32x64xbf16, #tpu.memory_space<vmem>>, %arg12: memref<1x32x64xbf16, #tpu.memory_space<vmem>>, %arg13: memref<1x64x32xbf16, #tpu.memory_space<vmem>>, %arg14: memref<1x2x8x128xbf16, #tpu.memory_space<vmem>>, %arg15: memref<1x2x128x8xbf16, #tpu.memory_space<vmem>>, %arg16: memref<1x32xf32, #tpu.memory_space<vmem>>, %arg17: memref<8x32xf32, #tpu.memory_space<vmem>>, %arg18: memref<8x32xf32, #tpu.memory_space<vmem>>, %arg19: memref<8x32xf32, #tpu.memory_space<vmem>>, %arg20: memref<32x8xf32, #tpu.memory_space<vmem>>) attributes {dimension_semantics = [#tpu.dimension_semantics<arbitrary>], iteration_bounds = array<i64: 2>, scalar_prefetch = 0 : i64, scratch_operands = 3 : i64, tpu.core_type = #tpu.core_type<tc>, window_params = [{pipeline_mode = #tpu.pipeline_mode<synchronous>, transform_indices = @transform_0, window_bounds = array<i64: 8, 32>}, {pipeline_mode = #tpu.pipeline_mode<synchronous>, transform_indices = @transform_1, window_bounds = array<i64: 8, 32>}, {pipeline_mode = #tpu.pipeline_mode<synchronous>, transform_indices = @transform_2, window_bounds = array<i64: 8, 8>}, {pipeline_mode = #tpu.pipeline_mode<synchronous>, transform_indices = @transform_3, window_bounds = array<i64: 8, 8>}, {pipeline_mode = #tpu.pipeline_mode<synchronous>, transform_indices = @transform_4, window_bounds = array<i64: 8, 8>}, {pipeline_mode = #tpu.pipeline_mode<synchronous>, transform_indices = @transform_5, window_bounds = array<i64: 16, 128>}, {transform_indices = @transform_6, window_bounds = array<i64: 1, 1, 32>}, {transform_indices = @transform_7, window_bounds = array<i64: 1, 1, 32>}, {transform_indices = @transform_8, window_bounds = array<i64: 1, 4, 32, 8>}, {transform_indices = @transform_9, window_bounds = array<i64: 1, 4, 8, 32>}, {transform_indices = @transform_10, window_bounds = array<i64: 1, 32, 64>}, {transform_indices = @transform_11, window_bounds = array<i64: 1, 32, 64>}, {transform_indices = @transform_12, window_bounds = array<i64: 1, 64, 32>}, {transform_indices = @transform_13, window_bounds = array<i64: 1, 2, 8, 128>}, {transform_indices = @transform_14, window_bounds = array<i64: 1, 2, 128, 8>}, {pipeline_mode = #tpu.pipeline_mode<synchronous>, transform_indices = @transform_15, window_bounds = array<i64: 1, 32>}, {pipeline_mode = #tpu.pipeline_mode<synchronous>, transform_indices = @transform_16, window_bounds = array<i64: 8, 32>}]} {
    %c0_i32 = arith.constant 0 : i32
    %0 = arith.cmpi eq, %arg0, %c0_i32 : i32
    %1 = arith.extui %0 : i1 to i32
    %c0_i32_0 = arith.constant 0 : i32
    %2 = arith.cmpi ne, %1, %c0_i32_0 : i32
    scf.if %2 {
      %c0_124 = arith.constant 0 : index
      %c0_125 = arith.constant 0 : index
      %171 = vector.load %arg1[%c0_124, %c0_125] : memref<8x32xf32, #tpu.memory_space<vmem>>, vector<8x32xf32>
      %c0_126 = arith.constant 0 : index
      %c0_127 = arith.constant 0 : index
      %172 = vector.load %arg18[%c0_126, %c0_127] : memref<8x32xf32, #tpu.memory_space<vmem>>, vector<8x32xf32>
      tpu.vector_store %arg18[%c0_126, %c0_127], %171 {strides = array<i32>} : memref<8x32xf32, #tpu.memory_space<vmem>>, vector<8x32xf32>,
      %c0_128 = arith.constant 0 : index
      %c0_129 = arith.constant 0 : index
      %173 = vector.load %arg2[%c0_128, %c0_129] : memref<8x32xf32, #tpu.memory_space<vmem>>, vector<8x32xf32>
      %c0_130 = arith.constant 0 : index
      %c0_131 = arith.constant 0 : index
      %174 = vector.load %arg19[%c0_130, %c0_131] : memref<8x32xf32, #tpu.memory_space<vmem>>, vector<8x32xf32>
      tpu.vector_store %arg19[%c0_130, %c0_131], %173 {strides = array<i32>} : memref<8x32xf32, #tpu.memory_space<vmem>>, vector<8x32xf32>,
    } else {
    }
    %c0 = arith.constant 0 : index
    %c0_1 = arith.constant 0 : index
    %3 = vector.load %arg18[%c0, %c0_1] : memref<8x32xf32, #tpu.memory_space<vmem>>, vector<8x32xf32>
    %c0_2 = arith.constant 0 : index
    %c0_3 = arith.constant 0 : index
    %4 = vector.load %arg19[%c0_2, %c0_3] : memref<8x32xf32, #tpu.memory_space<vmem>>, vector<8x32xf32>
    %5 = arith.addf %3, %4 : vector<8x32xf32>
    %c0_4 = arith.constant 0 : index
    %c0_5 = arith.constant 0 : index
    %c0_6 = arith.constant 0 : index
    %6 = vector.load %arg7[%c0_4, %c0_5, %c0_6] : memref<1x1x32xf32, #tpu.memory_space<vmem>>, vector<1x1x32xf32>
    %7 = vector.shape_cast %6 : vector<1x1x32xf32> to vector<1x32xf32>
    %8 = arith.mulf %5, %5 : vector<8x32xf32>
    %cst = arith.constant dense<0.000000e+00> : vector<8xf32>
    %9 = vector.multi_reduction <add>, %8, %cst [1] : vector<8x32xf32> to vector<8xf32>
    %10 = vector.shape_cast %9 : vector<8xf32> to vector<8x1xf32>
    %cst_7 = arith.constant 3.200000e+01 : f32
    %11 = vector.broadcast %cst_7 : f32 to vector<8x1xf32>
    %12 = arith.divf %10, %11 : vector<8x1xf32>
    %cst_8 = arith.constant 9.99999997E-7 : f32
    %13 = vector.broadcast %cst_8 : f32 to vector<8x1xf32>
    %14 = arith.addf %12, %13 : vector<8x1xf32>
    %15 = math.rsqrt %14 : vector<8x1xf32>
    %16 = vector.broadcast %15 : vector<8x1xf32> to vector<8x32xf32>
    %17 = arith.mulf %5, %16 : vector<8x32xf32>
    %18 = vector.broadcast %7 : vector<1x32xf32> to vector<8x32xf32>
    %19 = arith.mulf %17, %18 : vector<8x32xf32>
    %20 = arith.truncf %19 : vector<8x32xf32> to vector<8x32xbf16>
    %c0_9 = arith.constant 0 : index
    %c0_10 = arith.constant 0 : index
    %21 = vector.load %arg3[%c0_9, %c0_10] : memref<8x8xf32, #tpu.memory_space<vmem>>, vector<8x8xf32>
    %c0_11 = arith.constant 0 : index
    %c0_12 = arith.constant 0 : index
    %22 = vector.load %arg4[%c0_11, %c0_12] : memref<8x8xf32, #tpu.memory_space<vmem>>, vector<8x8xf32>
    %c0_13 = arith.constant 0 : index
    %c0_14 = arith.constant 0 : index
    %c0_15 = arith.constant 0 : index
    %c0_16 = arith.constant 0 : index
    %23 = vector.load %arg9[%c0_13, %c0_14, %c0_15, %c0_16] : memref<1x4x32x8xbf16, #tpu.memory_space<vmem>>, vector<1x1x32x8xbf16>
    %24 = vector.shape_cast %23 : vector<1x1x32x8xbf16> to vector<32x8xbf16>
    %cst_17 = arith.constant dense<0.000000e+00> : vector<8x8xf32>
    %25 = tpu.matmul %20, %24, %cst_17 {dimension_numbers = #tpu.dot_dimension_numbers<[1], [0], [0], [1], [0, 0, 1, 1], [], []>} : vector<8x32xbf16>, vector<32x8xbf16>, vector<8x8xf32> -> vector<8x8xf32>
    %26 = arith.truncf %25 : vector<8x8xf32> to vector<8x8xbf16>
    %c0_18 = arith.constant 0 : index
    %c0_19 = arith.constant 0 : index
    %27 = vector.load %arg5[%c0_18, %c0_19] : memref<8x8xbf16, #tpu.memory_space<vmem>>, vector<8x8xbf16>
    %cst_20 = arith.constant dense<0.000000e+00> : vector<8x8xf32>
    %28 = tpu.matmul %26, %27, %cst_20 {dimension_numbers = #tpu.dot_dimension_numbers<[1], [0], [0], [1], [0, 0, 1, 1], [], []>} : vector<8x8xbf16>, vector<8x8xbf16>, vector<8x8xf32> -> vector<8x8xf32>
    %29 = arith.mulf %25, %21 : vector<8x8xf32>
    %30 = arith.mulf %28, %22 : vector<8x8xf32>
    %31 = arith.addf %29, %30 : vector<8x8xf32>
    %c0_21 = arith.constant 0 : index
    %c0_22 = arith.constant 0 : index
    %32 = vector.load %arg20[%c0_21, %c0_22] : memref<32x8xf32, #tpu.memory_space<vmem>>, vector<8x8xf32>
    tpu.vector_store %arg20[%c0_21, %c0_22], %31 {strides = array<i32>} : memref<32x8xf32, #tpu.memory_space<vmem>>, vector<8x8xf32>,
    %c0_23 = arith.constant 0 : index
    %c1 = arith.constant 1 : index
    %c0_24 = arith.constant 0 : index
    %c0_25 = arith.constant 0 : index
    %33 = vector.load %arg9[%c0_23, %c1, %c0_24, %c0_25] : memref<1x4x32x8xbf16, #tpu.memory_space<vmem>>, vector<1x1x32x8xbf16>
    %34 = vector.shape_cast %33 : vector<1x1x32x8xbf16> to vector<32x8xbf16>
    %cst_26 = arith.constant dense<0.000000e+00> : vector<8x8xf32>
    %35 = tpu.matmul %20, %34, %cst_26 {dimension_numbers = #tpu.dot_dimension_numbers<[1], [0], [0], [1], [0, 0, 1, 1], [], []>} : vector<8x32xbf16>, vector<32x8xbf16>, vector<8x8xf32> -> vector<8x8xf32>
    %36 = arith.truncf %35 : vector<8x8xf32> to vector<8x8xbf16>
    %c0_27 = arith.constant 0 : index
    %c0_28 = arith.constant 0 : index
    %37 = vector.load %arg5[%c0_27, %c0_28] : memref<8x8xbf16, #tpu.memory_space<vmem>>, vector<8x8xbf16>
    %cst_29 = arith.constant dense<0.000000e+00> : vector<8x8xf32>
    %38 = tpu.matmul %36, %37, %cst_29 {dimension_numbers = #tpu.dot_dimension_numbers<[1], [0], [0], [1], [0, 0, 1, 1], [], []>} : vector<8x8xbf16>, vector<8x8xbf16>, vector<8x8xf32> -> vector<8x8xf32>
    %39 = arith.mulf %35, %21 : vector<8x8xf32>
    %40 = arith.mulf %38, %22 : vector<8x8xf32>
    %41 = arith.addf %39, %40 : vector<8x8xf32>
    %c8 = arith.constant 8 : index
    %c0_30 = arith.constant 0 : index
    %42 = vector.load %arg20[%c8, %c0_30] : memref<32x8xf32, #tpu.memory_space<vmem>>, vector<8x8xf32>
    tpu.vector_store %arg20[%c8, %c0_30], %41 {strides = array<i32>} : memref<32x8xf32, #tpu.memory_space<vmem>>, vector<8x8xf32>,
    %c0_31 = arith.constant 0 : index
    %c2 = arith.constant 2 : index
    %c0_32 = arith.constant 0 : index
    %c0_33 = arith.constant 0 : index
    %43 = vector.load %arg9[%c0_31, %c2, %c0_32, %c0_33] : memref<1x4x32x8xbf16, #tpu.memory_space<vmem>>, vector<1x1x32x8xbf16>
    %44 = vector.shape_cast %43 : vector<1x1x32x8xbf16> to vector<32x8xbf16>
    %cst_34 = arith.constant dense<0.000000e+00> : vector<8x8xf32>
    %45 = tpu.matmul %20, %44, %cst_34 {dimension_numbers = #tpu.dot_dimension_numbers<[1], [0], [0], [1], [0, 0, 1, 1], [], []>} : vector<8x32xbf16>, vector<32x8xbf16>, vector<8x8xf32> -> vector<8x8xf32>
    %46 = arith.truncf %45 : vector<8x8xf32> to vector<8x8xbf16>
    %c0_35 = arith.constant 0 : index
    %c0_36 = arith.constant 0 : index
    %47 = vector.load %arg5[%c0_35, %c0_36] : memref<8x8xbf16, #tpu.memory_space<vmem>>, vector<8x8xbf16>
    %cst_37 = arith.constant dense<0.000000e+00> : vector<8x8xf32>
    %48 = tpu.matmul %46, %47, %cst_37 {dimension_numbers = #tpu.dot_dimension_numbers<[1], [0], [0], [1], [0, 0, 1, 1], [], []>} : vector<8x8xbf16>, vector<8x8xbf16>, vector<8x8xf32> -> vector<8x8xf32>
    %49 = arith.mulf %45, %21 : vector<8x8xf32>
    %50 = arith.mulf %48, %22 : vector<8x8xf32>
    %51 = arith.addf %49, %50 : vector<8x8xf32>
    %c16 = arith.constant 16 : index
    %c0_38 = arith.constant 0 : index
    %52 = vector.load %arg20[%c16, %c0_38] : memref<32x8xf32, #tpu.memory_space<vmem>>, vector<8x8xf32>
    tpu.vector_store %arg20[%c16, %c0_38], %51 {strides = array<i32>} : memref<32x8xf32, #tpu.memory_space<vmem>>, vector<8x8xf32>,
    %c0_39 = arith.constant 0 : index
    %c3 = arith.constant 3 : index
    %c0_40 = arith.constant 0 : index
    %c0_41 = arith.constant 0 : index
    %53 = vector.load %arg9[%c0_39, %c3, %c0_40, %c0_41] : memref<1x4x32x8xbf16, #tpu.memory_space<vmem>>, vector<1x1x32x8xbf16>
    %54 = vector.shape_cast %53 : vector<1x1x32x8xbf16> to vector<32x8xbf16>
    %cst_42 = arith.constant dense<0.000000e+00> : vector<8x8xf32>
    %55 = tpu.matmul %20, %54, %cst_42 {dimension_numbers = #tpu.dot_dimension_numbers<[1], [0], [0], [1], [0, 0, 1, 1], [], []>} : vector<8x32xbf16>, vector<32x8xbf16>, vector<8x8xf32> -> vector<8x8xf32>
    %56 = arith.truncf %55 : vector<8x8xf32> to vector<8x8xbf16>
    %c0_43 = arith.constant 0 : index
    %c0_44 = arith.constant 0 : index
    %57 = vector.load %arg5[%c0_43, %c0_44] : memref<8x8xbf16, #tpu.memory_space<vmem>>, vector<8x8xbf16>
    %cst_45 = arith.constant dense<0.000000e+00> : vector<8x8xf32>
    %58 = tpu.matmul %56, %57, %cst_45 {dimension_numbers = #tpu.dot_dimension_numbers<[1], [0], [0], [1], [0, 0, 1, 1], [], []>} : vector<8x8xbf16>, vector<8x8xbf16>, vector<8x8xf32> -> vector<8x8xf32>
    %59 = arith.mulf %55, %21 : vector<8x8xf32>
    %60 = arith.mulf %58, %22 : vector<8x8xf32>
    %61 = arith.addf %59, %60 : vector<8x8xf32>
    %c24 = arith.constant 24 : index
    %c0_46 = arith.constant 0 : index
    %62 = vector.load %arg20[%c24, %c0_46] : memref<32x8xf32, #tpu.memory_space<vmem>>, vector<8x8xf32>
    tpu.vector_store %arg20[%c24, %c0_46], %61 {strides = array<i32>} : memref<32x8xf32, #tpu.memory_space<vmem>>, vector<8x8xf32>,
    %c0_47 = arith.constant 0 : index
    %c0_48 = arith.constant 0 : index
    %63 = vector.load %arg6[%c0_47, %c0_48] : memref<16x128xf32, #tpu.memory_space<vmem>>, vector<16x128xf32>
    %cst_49 = arith.constant 0.000000e+00 : f32
    %64 = vector.broadcast %cst_49 : f32 to vector<8x32xf32>
    %c0_50 = arith.constant 0 : index
    %c0_51 = arith.constant 0 : index
    %65 = vector.load %arg20[%c0_50, %c0_51] : memref<32x8xf32, #tpu.memory_space<vmem>>, vector<16x8xf32>
    %66 = arith.truncf %65 : vector<16x8xf32> to vector<16x8xbf16>
    %c0_52 = arith.constant 0 : index
    %c0_53 = arith.constant 0 : index
    %c0_54 = arith.constant 0 : index
    %c0_55 = arith.constant 0 : index
    %67 = vector.load %arg14[%c0_52, %c0_53, %c0_54, %c0_55] : memref<1x2x8x128xbf16, #tpu.memory_space<vmem>>, vector<1x1x8x128xbf16>
    %68 = vector.shape_cast %67 : vector<1x1x8x128xbf16> to vector<8x128xbf16>
    %cst_56 = arith.constant dense<0.000000e+00> : vector<16x128xf32>
    %69 = tpu.matmul %66, %68, %cst_56 {dimension_numbers = #tpu.dot_dimension_numbers<[1], [0], [0], [1], [0, 0, 1, 1], [], []>} : vector<16x8xbf16>, vector<8x128xbf16>, vector<16x128xf32> -> vector<16x128xf32>
    %70 = arith.addf %69, %63 : vector<16x128xf32>
    %cst_57 = arith.constant dense<0xFF800000> : vector<16xf32>
    %71 = vector.multi_reduction <maximumf>, %70, %cst_57 [1] : vector<16x128xf32> to vector<16xf32>
    %72 = vector.shape_cast %71 : vector<16xf32> to vector<16x1xf32>
    %73 = vector.broadcast %72 : vector<16x1xf32> to vector<16x128xf32>
    %74 = arith.subf %70, %73 : vector<16x128xf32>
    %75 = math.exp %74 : vector<16x128xf32>
    %cst_58 = arith.constant dense<0.000000e+00> : vector<16xf32>
    %76 = vector.multi_reduction <add>, %75, %cst_58 [1] : vector<16x128xf32> to vector<16xf32>
    %77 = vector.shape_cast %76 : vector<16xf32> to vector<16x1xf32>
    %cst_59 = arith.constant 1.000000e-30 : f32
    %78 = vector.broadcast %cst_59 : f32 to vector<16x1xf32>
    %79 = arith.maximumf %77, %78 : vector<16x1xf32>
    %80 = tpu.reciprocal %79 {approx = true} : vector<16x1xf32> -> vector<16x1xf32>
    %81 = vector.broadcast %80 : vector<16x1xf32> to vector<16x128xf32>
    %82 = arith.mulf %75, %81 : vector<16x128xf32>
    %83 = arith.truncf %82 : vector<16x128xf32> to vector<16x128xbf16>
    %c0_60 = arith.constant 0 : index
    %c0_61 = arith.constant 0 : index
    %c0_62 = arith.constant 0 : index
    %c0_63 = arith.constant 0 : index
    %84 = vector.load %arg15[%c0_60, %c0_61, %c0_62, %c0_63] : memref<1x2x128x8xbf16, #tpu.memory_space<vmem>>, vector<1x1x128x8xbf16>
    %85 = vector.shape_cast %84 : vector<1x1x128x8xbf16> to vector<128x8xbf16>
    %cst_64 = arith.constant dense<0.000000e+00> : vector<16x8xf32>
    %86 = tpu.matmul %83, %85, %cst_64 {dimension_numbers = #tpu.dot_dimension_numbers<[1], [0], [0], [1], [0, 0, 1, 1], [], []>} : vector<16x128xbf16>, vector<128x8xbf16>, vector<16x8xf32> -> vector<16x8xf32>
    %87 = vector.extract_strided_slice %86 {offsets = [0, 0], sizes = [8, 8], strides = [1, 1]} : vector<16x8xf32> to vector<8x8xf32>
    %88 = arith.truncf %87 : vector<8x8xf32> to vector<8x8xbf16>
    %c0_65 = arith.constant 0 : index
    %c0_66 = arith.constant 0 : index
    %c0_67 = arith.constant 0 : index
    %c0_68 = arith.constant 0 : index
    %89 = vector.load %arg10[%c0_65, %c0_66, %c0_67, %c0_68] : memref<1x4x8x32xbf16, #tpu.memory_space<vmem>>, vector<1x1x8x32xbf16>
    %90 = vector.shape_cast %89 : vector<1x1x8x32xbf16> to vector<8x32xbf16>
    %cst_69 = arith.constant dense<0.000000e+00> : vector<8x32xf32>
    %91 = tpu.matmul %88, %90, %cst_69 {dimension_numbers = #tpu.dot_dimension_numbers<[1], [0], [0], [1], [0, 0, 1, 1], [], []>} : vector<8x8xbf16>, vector<8x32xbf16>, vector<8x32xf32> -> vector<8x32xf32>
    %92 = arith.addf %64, %91 : vector<8x32xf32>
    %93 = vector.extract_strided_slice %86 {offsets = [8, 0], sizes = [8, 8], strides = [1, 1]} : vector<16x8xf32> to vector<8x8xf32>
    %94 = arith.truncf %93 : vector<8x8xf32> to vector<8x8xbf16>
    %c0_70 = arith.constant 0 : index
    %c1_71 = arith.constant 1 : index
    %c0_72 = arith.constant 0 : index
    %c0_73 = arith.constant 0 : index
    %95 = vector.load %arg10[%c0_70, %c1_71, %c0_72, %c0_73] : memref<1x4x8x32xbf16, #tpu.memory_space<vmem>>, vector<1x1x8x32xbf16>
    %96 = vector.shape_cast %95 : vector<1x1x8x32xbf16> to vector<8x32xbf16>
    %cst_74 = arith.constant dense<0.000000e+00> : vector<8x32xf32>
    %97 = tpu.matmul %94, %96, %cst_74 {dimension_numbers = #tpu.dot_dimension_numbers<[1], [0], [0], [1], [0, 0, 1, 1], [], []>} : vector<8x8xbf16>, vector<8x32xbf16>, vector<8x32xf32> -> vector<8x32xf32>
    %98 = arith.addf %92, %97 : vector<8x32xf32>
    %c16_75 = arith.constant 16 : index
    %c0_76 = arith.constant 0 : index
    %99 = vector.load %arg20[%c16_75, %c0_76] : memref<32x8xf32, #tpu.memory_space<vmem>>, vector<16x8xf32>
    %100 = arith.truncf %99 : vector<16x8xf32> to vector<16x8xbf16>
    %c0_77 = arith.constant 0 : index
    %c1_78 = arith.constant 1 : index
    %c0_79 = arith.constant 0 : index
    %c0_80 = arith.constant 0 : index
    %101 = vector.load %arg14[%c0_77, %c1_78, %c0_79, %c0_80] : memref<1x2x8x128xbf16, #tpu.memory_space<vmem>>, vector<1x1x8x128xbf16>
    %102 = vector.shape_cast %101 : vector<1x1x8x128xbf16> to vector<8x128xbf16>
    %cst_81 = arith.constant dense<0.000000e+00> : vector<16x128xf32>
    %103 = tpu.matmul %100, %102, %cst_81 {dimension_numbers = #tpu.dot_dimension_numbers<[1], [0], [0], [1], [0, 0, 1, 1], [], []>} : vector<16x8xbf16>, vector<8x128xbf16>, vector<16x128xf32> -> vector<16x128xf32>
    %104 = arith.addf %103, %63 : vector<16x128xf32>
    %cst_82 = arith.constant dense<0xFF800000> : vector<16xf32>
    %105 = vector.multi_reduction <maximumf>, %104, %cst_82 [1] : vector<16x128xf32> to vector<16xf32>
    %106 = vector.shape_cast %105 : vector<16xf32> to vector<16x1xf32>
    %107 = vector.broadcast %106 : vector<16x1xf32> to vector<16x128xf32>
    %108 = arith.subf %104, %107 : vector<16x128xf32>
    %109 = math.exp %108 : vector<16x128xf32>
    %cst_83 = arith.constant dense<0.000000e+00> : vector<16xf32>
    %110 = vector.multi_reduction <add>, %109, %cst_83 [1] : vector<16x128xf32> to vector<16xf32>
    %111 = vector.shape_cast %110 : vector<16xf32> to vector<16x1xf32>
    %cst_84 = arith.constant 1.000000e-30 : f32
    %112 = vector.broadcast %cst_84 : f32 to vector<16x1xf32>
    %113 = arith.maximumf %111, %112 : vector<16x1xf32>
    %114 = tpu.reciprocal %113 {approx = true} : vector<16x1xf32> -> vector<16x1xf32>
    %115 = vector.broadcast %114 : vector<16x1xf32> to vector<16x128xf32>
    %116 = arith.mulf %109, %115 : vector<16x128xf32>
    %117 = arith.truncf %116 : vector<16x128xf32> to vector<16x128xbf16>
    %c0_85 = arith.constant 0 : index
    %c1_86 = arith.constant 1 : index
    %c0_87 = arith.constant 0 : index
    %c0_88 = arith.constant 0 : index
    %118 = vector.load %arg15[%c0_85, %c1_86, %c0_87, %c0_88] : memref<1x2x128x8xbf16, #tpu.memory_space<vmem>>, vector<1x1x128x8xbf16>
    %119 = vector.shape_cast %118 : vector<1x1x128x8xbf16> to vector<128x8xbf16>
    %cst_89 = arith.constant dense<0.000000e+00> : vector<16x8xf32>
    %120 = tpu.matmul %117, %119, %cst_89 {dimension_numbers = #tpu.dot_dimension_numbers<[1], [0], [0], [1], [0, 0, 1, 1], [], []>} : vector<16x128xbf16>, vector<128x8xbf16>, vector<16x8xf32> -> vector<16x8xf32>
    %121 = vector.extract_strided_slice %120 {offsets = [0, 0], sizes = [8, 8], strides = [1, 1]} : vector<16x8xf32> to vector<8x8xf32>
    %122 = arith.truncf %121 : vector<8x8xf32> to vector<8x8xbf16>
    %c0_90 = arith.constant 0 : index
    %c2_91 = arith.constant 2 : index
    %c0_92 = arith.constant 0 : index
    %c0_93 = arith.constant 0 : index
    %123 = vector.load %arg10[%c0_90, %c2_91, %c0_92, %c0_93] : memref<1x4x8x32xbf16, #tpu.memory_space<vmem>>, vector<1x1x8x32xbf16>
    %124 = vector.shape_cast %123 : vector<1x1x8x32xbf16> to vector<8x32xbf16>
    %cst_94 = arith.constant dense<0.000000e+00> : vector<8x32xf32>
    %125 = tpu.matmul %122, %124, %cst_94 {dimension_numbers = #tpu.dot_dimension_numbers<[1], [0], [0], [1], [0, 0, 1, 1], [], []>} : vector<8x8xbf16>, vector<8x32xbf16>, vector<8x32xf32> -> vector<8x32xf32>
    %126 = arith.addf %98, %125 : vector<8x32xf32>
    %127 = vector.extract_strided_slice %120 {offsets = [8, 0], sizes = [8, 8], strides = [1, 1]} : vector<16x8xf32> to vector<8x8xf32>
    %128 = arith.truncf %127 : vector<8x8xf32> to vector<8x8xbf16>
    %c0_95 = arith.constant 0 : index
    %c3_96 = arith.constant 3 : index
    %c0_97 = arith.constant 0 : index
    %c0_98 = arith.constant 0 : index
    %129 = vector.load %arg10[%c0_95, %c3_96, %c0_97, %c0_98] : memref<1x4x8x32xbf16, #tpu.memory_space<vmem>>, vector<1x1x8x32xbf16>
    %130 = vector.shape_cast %129 : vector<1x1x8x32xbf16> to vector<8x32xbf16>
    %cst_99 = arith.constant dense<0.000000e+00> : vector<8x32xf32>
    %131 = tpu.matmul %128, %130, %cst_99 {dimension_numbers = #tpu.dot_dimension_numbers<[1], [0], [0], [1], [0, 0, 1, 1], [], []>} : vector<8x8xbf16>, vector<8x32xbf16>, vector<8x32xf32> -> vector<8x32xf32>
    %132 = arith.addf %126, %131 : vector<8x32xf32>
    %133 = arith.addf %132, %5 : vector<8x32xf32>
    %c0_100 = arith.constant 0 : index
    %c0_101 = arith.constant 0 : index
    %c0_102 = arith.constant 0 : index
    %134 = vector.load %arg8[%c0_100, %c0_101, %c0_102] : memref<1x1x32xf32, #tpu.memory_space<vmem>>, vector<1x1x32xf32>
    %135 = vector.shape_cast %134 : vector<1x1x32xf32> to vector<1x32xf32>
    %136 = arith.mulf %133, %133 : vector<8x32xf32>
    %cst_103 = arith.constant dense<0.000000e+00> : vector<8xf32>
    %137 = vector.multi_reduction <add>, %136, %cst_103 [1] : vector<8x32xf32> to vector<8xf32>
    %138 = vector.shape_cast %137 : vector<8xf32> to vector<8x1xf32>
    %cst_104 = arith.constant 3.200000e+01 : f32
    %139 = vector.broadcast %cst_104 : f32 to vector<8x1xf32>
    %140 = arith.divf %138, %139 : vector<8x1xf32>
    %cst_105 = arith.constant 9.99999997E-7 : f32
    %141 = vector.broadcast %cst_105 : f32 to vector<8x1xf32>
    %142 = arith.addf %140, %141 : vector<8x1xf32>
    %143 = math.rsqrt %142 : vector<8x1xf32>
    %144 = vector.broadcast %143 : vector<8x1xf32> to vector<8x32xf32>
    %145 = arith.mulf %133, %144 : vector<8x32xf32>
    %146 = vector.broadcast %135 : vector<1x32xf32> to vector<8x32xf32>
    %147 = arith.mulf %145, %146 : vector<8x32xf32>
    %148 = arith.truncf %147 : vector<8x32xf32> to vector<8x32xbf16>
    %c0_106 = arith.constant 0 : index
    %c0_107 = arith.constant 0 : index
    %c0_108 = arith.constant 0 : index
    %149 = vector.load %arg11[%c0_106, %c0_107, %c0_108] : memref<1x32x64xbf16, #tpu.memory_space<vmem>>, vector<1x32x64xbf16>
    %150 = vector.shape_cast %149 : vector<1x32x64xbf16> to vector<32x64xbf16>
    %cst_109 = arith.constant dense<0.000000e+00> : vector<8x64xf32>
    %151 = tpu.matmul %148, %150, %cst_109 {dimension_numbers = #tpu.dot_dimension_numbers<[1], [0], [0], [1], [0, 0, 1, 1], [], []>} : vector<8x32xbf16>, vector<32x64xbf16>, vector<8x64xf32> -> vector<8x64xf32>
    %c0_110 = arith.constant 0 : index
    %c0_111 = arith.constant 0 : index
    %c0_112 = arith.constant 0 : index
    %152 = vector.load %arg12[%c0_110, %c0_111, %c0_112] : memref<1x32x64xbf16, #tpu.memory_space<vmem>>, vector<1x32x64xbf16>
    %153 = vector.shape_cast %152 : vector<1x32x64xbf16> to vector<32x64xbf16>
    %cst_113 = arith.constant dense<0.000000e+00> : vector<8x64xf32>
    %154 = tpu.matmul %148, %153, %cst_113 {dimension_numbers = #tpu.dot_dimension_numbers<[1], [0], [0], [1], [0, 0, 1, 1], [], []>} : vector<8x32xbf16>, vector<32x64xbf16>, vector<8x64xf32> -> vector<8x64xf32>
    %155 = arith.negf %151 : vector<8x64xf32>
    %156 = math.exp %155 : vector<8x64xf32>
    %cst_114 = arith.constant 1.000000e+00 : f32
    %157 = vector.broadcast %cst_114 : f32 to vector<8x64xf32>
    %158 = arith.addf %157, %156 : vector<8x64xf32>
    %159 = arith.divf %157, %158 : vector<8x64xf32>
    %160 = arith.mulf %151, %159 : vector<8x64xf32>
    %161 = arith.mulf %160, %154 : vector<8x64xf32>
    %162 = arith.truncf %161 : vector<8x64xf32> to vector<8x64xbf16>
    %c0_115 = arith.constant 0 : index
    %c0_116 = arith.constant 0 : index
    %c0_117 = arith.constant 0 : index
    %163 = vector.load %arg13[%c0_115, %c0_116, %c0_117] : memref<1x64x32xbf16, #tpu.memory_space<vmem>>, vector<1x64x32xbf16>
    %164 = vector.shape_cast %163 : vector<1x64x32xbf16> to vector<64x32xbf16>
    %cst_118 = arith.constant dense<0.000000e+00> : vector<8x32xf32>
    %165 = tpu.matmul %162, %164, %cst_118 {dimension_numbers = #tpu.dot_dimension_numbers<[1], [0], [0], [1], [0, 0, 1, 1], [], []>} : vector<8x64xbf16>, vector<64x32xbf16>, vector<8x32xf32> -> vector<8x32xf32>
    %c0_119 = arith.constant 0 : index
    %c0_120 = arith.constant 0 : index
    %166 = vector.load %arg18[%c0_119, %c0_120] : memref<8x32xf32, #tpu.memory_space<vmem>>, vector<8x32xf32>
    tpu.vector_store %arg18[%c0_119, %c0_120], %165 {strides = array<i32>} : memref<8x32xf32, #tpu.memory_space<vmem>>, vector<8x32xf32>,
    %c0_121 = arith.constant 0 : index
    %c0_122 = arith.constant 0 : index
    %167 = vector.load %arg19[%c0_121, %c0_122] : memref<8x32xf32, #tpu.memory_space<vmem>>, vector<8x32xf32>
    tpu.vector_store %arg19[%c0_121, %c0_122], %133 {strides = array<i32>} : memref<8x32xf32, #tpu.memory_space<vmem>>, vector<8x32xf32>,
    %c1_i32 = arith.constant 1 : i32
    %168 = arith.cmpi eq, %arg0, %c1_i32 : i32
    %169 = arith.extui %168 : i1 to i32
    %c0_i32_123 = arith.constant 0 : i32
    %170 = arith.cmpi ne, %169, %c0_i32_123 : i32
    scf.if %170 {
      %171 = arith.addf %165, %133 : vector<8x32xf32>
      %c0_124 = arith.constant 0 : index
      %c0_125 = arith.constant 0 : index
      %172 = vector.load %arg16[%c0_124, %c0_125] : memref<1x32xf32, #tpu.memory_space<vmem>>, vector<1x32xf32>
      %173 = arith.mulf %171, %171 : vector<8x32xf32>
      %cst_126 = arith.constant dense<0.000000e+00> : vector<8xf32>
      %174 = vector.multi_reduction <add>, %173, %cst_126 [1] : vector<8x32xf32> to vector<8xf32>
      %175 = vector.shape_cast %174 : vector<8xf32> to vector<8x1xf32>
      %cst_127 = arith.constant 3.200000e+01 : f32
      %176 = vector.broadcast %cst_127 : f32 to vector<8x1xf32>
      %177 = arith.divf %175, %176 : vector<8x1xf32>
      %cst_128 = arith.constant 9.99999997E-7 : f32
      %178 = vector.broadcast %cst_128 : f32 to vector<8x1xf32>
      %179 = arith.addf %177, %178 : vector<8x1xf32>
      %180 = math.rsqrt %179 : vector<8x1xf32>
      %181 = vector.broadcast %180 : vector<8x1xf32> to vector<8x32xf32>
      %182 = arith.mulf %171, %181 : vector<8x32xf32>
      %183 = vector.broadcast %172 : vector<1x32xf32> to vector<8x32xf32>
      %184 = arith.mulf %182, %183 : vector<8x32xf32>
      %c0_129 = arith.constant 0 : index
      %c0_130 = arith.constant 0 : index
      %185 = vector.load %arg17[%c0_129, %c0_130] : memref<8x32xf32, #tpu.memory_space<vmem>>, vector<8x32xf32>
      tpu.vector_store %arg17[%c0_129, %c0_130], %184 {strides = array<i32>} : memref<8x32xf32, #tpu.memory_space<vmem>>, vector<8x32xf32>,
    } else {
    }
    return
  }
  func.func @transform_0(%arg0: i32) -> (i32, i32) {
    %c0_i32 = arith.constant 0 : i32
    %c0_i32_0 = arith.constant 0 : i32
    %c0_i32_1 = arith.constant 0 : i32
    return %c0_i32, %c0_i32_0 : i32, i32
  }
  func.func @transform_1(%arg0: i32) -> (i32, i32) {
    %c0_i32 = arith.constant 0 : i32
    %c0_i32_0 = arith.constant 0 : i32
    %c0_i32_1 = arith.constant 0 : i32
    return %c0_i32, %c0_i32_0 : i32, i32
  }
  func.func @transform_2(%arg0: i32) -> (i32, i32) {
    %c0_i32 = arith.constant 0 : i32
    %c0_i32_0 = arith.constant 0 : i32
    %c0_i32_1 = arith.constant 0 : i32
    return %c0_i32, %c0_i32_0 : i32, i32
  }
  func.func @transform_3(%arg0: i32) -> (i32, i32) {
    %c0_i32 = arith.constant 0 : i32
    %c0_i32_0 = arith.constant 0 : i32
    %c0_i32_1 = arith.constant 0 : i32
    return %c0_i32, %c0_i32_0 : i32, i32
  }
  func.func @transform_4(%arg0: i32) -> (i32, i32) {
    %c0_i32 = arith.constant 0 : i32
    %c0_i32_0 = arith.constant 0 : i32
    %c0_i32_1 = arith.constant 0 : i32
    return %c0_i32, %c0_i32_0 : i32, i32
  }
  func.func @transform_5(%arg0: i32) -> (i32, i32) {
    %c0_i32 = arith.constant 0 : i32
    %c0_i32_0 = arith.constant 0 : i32
    %c0_i32_1 = arith.constant 0 : i32
    return %c0_i32, %c0_i32_0 : i32, i32
  }
  func.func @transform_6(%arg0: i32) -> (i32, i32, i32) {
    %c0_i32 = arith.constant 0 : i32
    %c0_i32_0 = arith.constant 0 : i32
    %c0_i32_1 = arith.constant 0 : i32
    return %arg0, %c0_i32, %c0_i32_0 : i32, i32, i32
  }
  func.func @transform_7(%arg0: i32) -> (i32, i32, i32) {
    %c0_i32 = arith.constant 0 : i32
    %c0_i32_0 = arith.constant 0 : i32
    %c0_i32_1 = arith.constant 0 : i32
    return %arg0, %c0_i32, %c0_i32_0 : i32, i32, i32
  }
  func.func @transform_8(%arg0: i32) -> (i32, i32, i32, i32) {
    %c0_i32 = arith.constant 0 : i32
    %c0_i32_0 = arith.constant 0 : i32
    %c0_i32_1 = arith.constant 0 : i32
    %c0_i32_2 = arith.constant 0 : i32
    return %arg0, %c0_i32, %c0_i32_0, %c0_i32_1 : i32, i32, i32, i32
  }
  func.func @transform_9(%arg0: i32) -> (i32, i32, i32, i32) {
    %c0_i32 = arith.constant 0 : i32
    %c0_i32_0 = arith.constant 0 : i32
    %c0_i32_1 = arith.constant 0 : i32
    %c0_i32_2 = arith.constant 0 : i32
    return %arg0, %c0_i32, %c0_i32_0, %c0_i32_1 : i32, i32, i32, i32
  }
  func.func @transform_10(%arg0: i32) -> (i32, i32, i32) {
    %c0_i32 = arith.constant 0 : i32
    %c0_i32_0 = arith.constant 0 : i32
    %c0_i32_1 = arith.constant 0 : i32
    return %arg0, %c0_i32, %c0_i32_0 : i32, i32, i32
  }
  func.func @transform_11(%arg0: i32) -> (i32, i32, i32) {
    %c0_i32 = arith.constant 0 : i32
    %c0_i32_0 = arith.constant 0 : i32
    %c0_i32_1 = arith.constant 0 : i32
    return %arg0, %c0_i32, %c0_i32_0 : i32, i32, i32
  }
  func.func @transform_12(%arg0: i32) -> (i32, i32, i32) {
    %c0_i32 = arith.constant 0 : i32
    %c0_i32_0 = arith.constant 0 : i32
    %c0_i32_1 = arith.constant 0 : i32
    return %arg0, %c0_i32, %c0_i32_0 : i32, i32, i32
  }
  func.func @transform_13(%arg0: i32) -> (i32, i32, i32, i32) {
    %c0_i32 = arith.constant 0 : i32
    %c0_i32_0 = arith.constant 0 : i32
    %c0_i32_1 = arith.constant 0 : i32
    %c0_i32_2 = arith.constant 0 : i32
    return %arg0, %c0_i32, %c0_i32_0, %c0_i32_1 : i32, i32, i32, i32
  }
  func.func @transform_14(%arg0: i32) -> (i32, i32, i32, i32) {
    %c0_i32 = arith.constant 0 : i32
    %c0_i32_0 = arith.constant 0 : i32
    %c0_i32_1 = arith.constant 0 : i32
    %c0_i32_2 = arith.constant 0 : i32
    return %arg0, %c0_i32, %c0_i32_0, %c0_i32_1 : i32, i32, i32, i32
  }
  func.func @transform_15(%arg0: i32) -> (i32, i32) {
    %c0_i32 = arith.constant 0 : i32
    %c0_i32_0 = arith.constant 0 : i32
    %c0_i32_1 = arith.constant 0 : i32
    return %c0_i32, %c0_i32_0 : i32, i32
  }
  func.func @transform_16(%arg0: i32) -> (i32, i32) {
    %c0_i32 = arith.constant 0 : i32
    %c0_i32_0 = arith.constant 0 : i32
    %c0_i32_1 = arith.constant 0 : i32
    return %c0_i32, %c0_i32_0 : i32, i32
  }
}

</mosaic_0001>

<llo_original>
// kernel: tpu_custom_call.1
$region0: #{tpu_custom_call.1}
  #allocation0 [shape = 'u32[]', space=smem, size = 0x4, offset = 0x4, fixed_abs, tag = 'smem constant byte address 0x4 - core index']
  #allocation1 [shape = 'u32[144,128]{1,0:T(1,128)}', space=vmem, size = 0x12000, scoped, tag = 'internal scratch']
  #allocation2 [shape = 'f32[8,32]{1,0:T(8,128)}', space=vmem, size = 0x1000, scoped, tag = 'scratch operand']
  #allocation3 [shape = 'f32[8,32]{1,0:T(8,128)}', space=vmem, size = 0x1000, scoped, tag = 'scratch operand']
  #allocation4 [shape = 'f32[32,8]{1,0:T(8,128)}', space=vmem, size = 0x4000, scoped, tag = 'scratch operand']
  %s0 = inlined_call_operand.vmem [shape: f32[8,32], index: 0, kind: input, shape index: {}]
  %s1 = inlined_call_operand.vmem [shape: f32[8,32], index: 1, kind: input, shape index: {}]
  %s2 = inlined_call_operand.vmem [shape: f32[8,8], index: 2, kind: input, shape index: {}]
  %s3 = inlined_call_operand.vmem [shape: f32[8,8], index: 3, kind: input, shape index: {}]
  %s4 = inlined_call_operand.vmem [shape: bf16[8,8], index: 4, kind: input, shape index: {}]
  %s5 = inlined_call_operand.vmem [shape: f32[16,128], index: 5, kind: input, shape index: {}]
  %s6 = inlined_call_operand.vmem [shape: f32[2,1,32], index: 6, kind: input, shape index: {}]
  %s7 = inlined_call_operand.vmem [shape: f32[2,1,32], index: 7, kind: input, shape index: {}]
  %s8 = inlined_call_operand.vmem [shape: bf16[2,4,32,8], index: 8, kind: input, shape index: {}]
  %s9 = inlined_call_operand.vmem [shape: bf16[2,4,8,32], index: 9, kind: input, shape index: {}]
  %s10 = inlined_call_operand.vmem [shape: bf16[2,32,64], index: 10, kind: input, shape index: {}]
  %s11 = inlined_call_operand.vmem [shape: bf16[2,32,64], index: 11, kind: input, shape index: {}]
  %s12 = inlined_call_operand.vmem [shape: bf16[2,64,32], index: 12, kind: input, shape index: {}]
  %s13 = inlined_call_operand.vmem [shape: bf16[2,2,8,128], index: 13, kind: input, shape index: {}]
  %s14 = inlined_call_operand.vmem [shape: bf16[2,2,128,8], index: 14, kind: input, shape index: {}]
  %s15 = inlined_call_operand.vmem [shape: f32[1,32], index: 15, kind: input, shape index: {}]
  %s16 = inlined_call_operand.hbm [shape: f32[8,32], index: 16, kind: output, shape index: {}]
  %s17 = sld [smem:[#allocation0]]
  $region105: #{tpu_custom_call.1} parent=0
    _
  %s19 = ssub.s32 1, %s17
  %s20 = scalar_select 0, %s19, %s17
  $region1: #{tpu_custom_call.1} parent=0
    #allocation5 [shape = 'u8[4096]{0}', space=vmem, size = 0x1000, scoped, tag = 'output window, operand 0, single buffered']
    #allocation6 [shape = 's32[2]{0}', space=sflag, size = 0x8, scoped, tag = 'scoped memory for tpu_custom_call.1']
    %21 = vsyncpa [#allocation6], 0
    loop: start=0, step=1, limit=4
    $region2: #{tpu_custom_call.1} parent=1 // loop_pre_header
      _
    $region3: #{tpu_custom_call.1} parent=1 // loop_header
      %s23 = sphi 0, %s27
      %p24 = scmp.ge.s32.totalorder %s23, 4
      %s31 = sphi 0, %s31
      %s33 = sphi 0, %s31
      %s34 = sphi 0, %s33
      %s48 = sphi 0, %s34
      %s52 = sphi 0, %s52
      %s54 = sphi 0, %s52
      %s55 = sphi 0, %s54
      %s69 = sphi 0, %s55
      %s73 = sphi 0, %s73
      %s75 = sphi 0, %s73
      %s76 = sphi 0, %s75
      %s90 = sphi 0, %s76
      %s94 = sphi 0, %s94
      %s96 = sphi 0, %s94
      %s97 = sphi 0, %s96
      %s111 = sphi 0, %s97
      %s115 = sphi 0, %s115
      %s117 = sphi 0, %s115
      %s118 = sphi 0, %s117
      %s132 = sphi 0, %s118
      %s136 = sphi 0, %s136
      %s138 = sphi 0, %s136
      %s139 = sphi 0, %s138
      %s153 = sphi 0, %s139
      %s159 = sphi 0, %s161
      %s162 = sphi 0, %s159
      %s163 = sphi 0, %s162
      %s179 = sphi 0, %s163
      %s185 = sphi 0, %s187
      %s188 = sphi 0, %s185
      %s189 = sphi 0, %s188
      %s205 = sphi 0, %s189
      %s211 = sphi 0, %s213
      %s214 = sphi 0, %s211
      %s215 = sphi 0, %s214
      %s231 = sphi 0, %s215
      %s237 = sphi 0, %s239
      %s240 = sphi 0, %s237
      %s241 = sphi 0, %s240
      %s257 = sphi 0, %s241
      %s263 = sphi 0, %s265
      %s266 = sphi 0, %s263
      %s267 = sphi 0, %s266
      %s283 = sphi 0, %s267
      %s289 = sphi 0, %s291
      %s292 = sphi 0, %s289
      %s293 = sphi 0, %s292
      %s309 = sphi 0, %s293
      %s315 = sphi 0, %s317
      %s318 = sphi 0, %s315
      %s319 = sphi 0, %s318
      %s335 = sphi 0, %s319
      %s341 = sphi 0, %s343
      %s344 = sphi 0, %s341
      %s345 = sphi 0, %s344
      %s361 = sphi 0, %s345
      %s367 = sphi 0, %s369
      %s370 = sphi 0, %s367
      %s371 = sphi 0, %s370
      %s387 = sphi 0, %s371
      %s391 = sphi 0, %s391
      %s393 = sphi 0, %s391
      %s394 = sphi 0, %s393
      %s408 = sphi 0, %s394
      %s412 = sphi 0, %s412
      %s414 = sphi 0, %s412
      %s415 = sphi 0, %s414
      %s429 = sphi 0, %s415
    $region4: #{tpu_custom_call.1} parent=1 // loop_header_branch
      %26 = sbr.rel (%p24) target = $region8
    $region5: #{tpu_custom_call.1} parent=1 // loop_body
      %s28 = ssub.s32 %s23, 1
      %s29 = ssub.s32 %s23, 2
      %s30 = sadd.s32 %s23, 1
      %s32 = sadd.s32 %s31, 1
      %p35 = scmp.eq.s32.totalorder %s23, 1
      %p36 = scmp.ne.s32.totalorder %s31, %s33
      %p37 = scmp.eq.s32.totalorder %s23, 0
      %p38 = por %p36, %p37
      %p39 = scmp.ne.s32.totalorder %s31, %s33
      %p40 = scmp.eq.s32.totalorder %s28, 1
      %p41 = por %p39, %p40
      %p42 = scmp.ne.s32.totalorder %s33, %s34
      %p43 = scmp.eq.s32.totalorder %s28, 0
      %p44 = por %p42, %p43
      %p45 = scmp.ne.s32.totalorder %s33, %s34
      %p46 = scmp.eq.s32.totalorder %s29, 1
      %p47 = por %p45, %p46
      %p49 = scmp.ne.s32.totalorder %s34, %s48
      %p50 = scmp.eq.s32.totalorder %s29, 0
      %p51 = por %p49, %p50
      %s53 = sadd.s32 %s52, 1
      %p56 = scmp.eq.s32.totalorder %s23, 1
      %p57 = scmp.ne.s32.totalorder %s52, %s54
      %p58 = scmp.eq.s32.totalorder %s23, 0
      %p59 = por %p57, %p58
      %p60 = scmp.ne.s32.totalorder %s52, %s54
      %p61 = scmp.eq.s32.totalorder %s28, 1
      %p62 = por %p60, %p61
      %p63 = scmp.ne.s32.totalorder %s54, %s55
      %p64 = scmp.eq.s32.totalorder %s28, 0
      %p65 = por %p63, %p64
      %p66 = scmp.ne.s32.totalorder %s54, %s55
      %p67 = scmp.eq.s32.totalorder %s29, 1
      %p68 = por %p66, %p67
      %p70 = scmp.ne.s32.totalorder %s55, %s69
      %p71 = scmp.eq.s32.totalorder %s29, 0
      %p72 = por %p70, %p71
      %s74 = sadd.s32 %s73, 1
      %p77 = scmp.eq.s32.totalorder %s23, 1
      %p78 = scmp.ne.s32.totalorder %s73, %s75
      %p79 = scmp.eq.s32.totalorder %s23, 0
      %p80 = por %p78, %p79
      %p81 = scmp.ne.s32.totalorder %s73, %s75
      %p82 = scmp.eq.s32.totalorder %s28, 1
      %p83 = por %p81, %p82
      %p84 = scmp.ne.s32.totalorder %s75, %s76
      %p85 = scmp.eq.s32.totalorder %s28, 0
      %p86 = por %p84, %p85
      %p87 = scmp.ne.s32.totalorder %s75, %s76
      %p88 = scmp.eq.s32.totalorder %s29, 1
      %p89 = por %p87, %p88
      %p91 = scmp.ne.s32.totalorder %s76, %s90
      %p92 = scmp.eq.s32.totalorder %s29, 0
      %p93 = por %p91, %p92
      %s95 = sadd.s32 %s94, 1
      %p98 = scmp.eq.s32.totalorder %s23, 1
      %p99 = scmp.ne.s32.totalorder %s94, %s96
      %p100 = scmp.eq.s32.totalorder %s23, 0
      %p101 = por %p99, %p100
      %p102 = scmp.ne.s32.totalorder %s94, %s96
      %p103 = scmp.eq.s32.totalorder %s28, 1
      %p104 = por %p102, %p103
      %p105 = scmp.ne.s32.totalorder %s96, %s97
      %p106 = scmp.eq.s32.totalorder %s28, 0
      %p107 = por %p105, %p106
      %p108 = scmp.ne.s32.totalorder %s96, %s97
      %p109 = scmp.eq.s32.totalorder %s29, 1
      %p110 = por %p108, %p109
      %p112 = scmp.ne.s32.totalorder %s97, %s111
      %p113 = scmp.eq.s32.totalorder %s29, 0
      %p114 = por %p112, %p113
      %s116 = sadd.s32 %s115, 1
      %p119 = scmp.eq.s32.totalorder %s23, 1
      %p120 = scmp.ne.s32.totalorder %s115, %s117
      %p121 = scmp.eq.s32.totalorder %s23, 0
      %p122 = por %p120, %p121
      %p123 = scmp.ne.s32.totalorder %s115, %s117
      %p124 = scmp.eq.s32.totalorder %s28, 1
      %p125 = por %p123, %p124
      %p126 = scmp.ne.s32.totalorder %s117, %s118
      %p127 = scmp.eq.s32.totalorder %s28, 0
      %p128 = por %p126, %p127
      %p129 = scmp.ne.s32.totalorder %s117, %s118
      %p130 = scmp.eq.s32.totalorder %s29, 1
      %p131 = por %p129, %p130
      %p133 = scmp.ne.s32.totalorder %s118, %s132
      %p134 = scmp.eq.s32.totalorder %s29, 0
      %p135 = por %p133, %p134
      %s137 = sadd.s32 %s136, 1
      %p140 = scmp.eq.s32.totalorder %s23, 1
      %p141 = scmp.ne.s32.totalorder %s136, %s138
      %p142 = scmp.eq.s32.totalorder %s23, 0
      %p143 = por %p141, %p142
      %p144 = scmp.ne.s32.totalorder %s136, %s138
      %p145 = scmp.eq.s32.totalorder %s28, 1
      %p146 = por %p144, %p145
      %p147 = scmp.ne.s32.totalorder %s138, %s139
      %p148 = scmp.eq.s32.totalorder %s28, 0
      %p149 = por %p147, %p148
      %p150 = scmp.ne.s32.totalorder %s138, %s139
      %p151 = scmp.eq.s32.totalorder %s29, 1
      %p152 = por %p150, %p151
      %p154 = scmp.ne.s32.totalorder %s139, %s153
      %p155 = scmp.eq.s32.totalorder %s29, 0
      %p156 = por %p154, %p155
      %s157 = ssub.s32 %s23, %s30
      %p158 = scmp.eq.s32.totalorder %s157, 0
      %s160 = sadd.s32 %s159, 1
      %s161 = scalar_select %p158, %s159, %s160
      %p164 = pneg %p158
      %p165 = scmp.eq.s32.totalorder %s23, 1
      %p166 = por %p164, %p165
      %p167 = scmp.ne.s32.totalorder %s159, %s162
      %p168 = scmp.eq.s32.totalorder %s23, 0
      %p169 = por %p167, %p168
      %p170 = scmp.ne.s32.totalorder %s159, %s162
      %p171 = scmp.eq.s32.totalorder %s28, 1
      %p172 = por %p170, %p171
      %p173 = scmp.ne.s32.totalorder %s162, %s163
      %p174 = scmp.eq.s32.totalorder %s28, 0
      %p175 = por %p173, %p174
      %p176 = scmp.ne.s32.totalorder %s162, %s163
      %p177 = scmp.eq.s32.totalorder %s29, 1
      %p178 = por %p176, %p177
      %p180 = scmp.ne.s32.totalorder %s163, %s179
      %p181 = scmp.eq.s32.totalorder %s29, 0
      %p182 = por %p180, %p181
      %s183 = ssub.s32 %s23, %s30
      %p184 = scmp.eq.s32.totalorder %s183, 0
      %s186 = sadd.s32 %s185, 1
      %s187 = scalar_select %p184, %s185, %s186
      %p190 = pneg %p184
      %p191 = scmp.eq.s32.totalorder %s23, 1
      %p192 = por %p190, %p191
      %p193 = scmp.ne.s32.totalorder %s185, %s188
      %p194 = scmp.eq.s32.totalorder %s23, 0
      %p195 = por %p193, %p194
      %p196 = scmp.ne.s32.totalorder %s185, %s188
      %p197 = scmp.eq.s32.totalorder %s28, 1
      %p198 = por %p196, %p197
      %p199 = scmp.ne.s32.totalorder %s188, %s189
      %p200 = scmp.eq.s32.totalorder %s28, 0
      %p201 = por %p199, %p200
      %p202 = scmp.ne.s32.totalorder %s188, %s189
      %p203 = scmp.eq.s32.totalorder %s29, 1
      %p204 = por %p202, %p203
      %p206 = scmp.ne.s32.totalorder %s189, %s205
      %p207 = scmp.eq.s32.totalorder %s29, 0
      %p208 = por %p206, %p207
      %s209 = ssub.s32 %s23, %s30
      %p210 = scmp.eq.s32.totalorder %s209, 0
      %s212 = sadd.s32 %s211, 1
      %s213 = scalar_select %p210, %s211, %s212
      %p216 = pneg %p210
      %p217 = scmp.eq.s32.totalorder %s23, 1
      %p218 = por %p216, %p217
      %p219 = scmp.ne.s32.totalorder %s211, %s214
      %p220 = scmp.eq.s32.totalorder %s23, 0
      %p221 = por %p219, %p220
      %p222 = scmp.ne.s32.totalorder %s211, %s214
      %p223 = scmp.eq.s32.totalorder %s28, 1
      %p224 = por %p222, %p223
      %p225 = scmp.ne.s32.totalorder %s214, %s215
      %p226 = scmp.eq.s32.totalorder %s28, 0
      %p227 = por %p225, %p226
      %p228 = scmp.ne.s32.totalorder %s214, %s215
      %p229 = scmp.eq.s32.totalorder %s29, 1
      %p230 = por %p228, %p229
      %p232 = scmp.ne.s32.totalorder %s215, %s231
      %p233 = scmp.eq.s32.totalorder %s29, 0
      %p234 = por %p232, %p233
      %s235 = ssub.s32 %s23, %s30
      %p236 = scmp.eq.s32.totalorder %s235, 0
      %s238 = sadd.s32 %s237, 1
      %s239 = scalar_select %p236, %s237, %s238
      %p242 = pneg %p236
      %p243 = scmp.eq.s32.totalorder %s23, 1
      %p244 = por %p242, %p243
      %p245 = scmp.ne.s32.totalorder %s237, %s240
      %p246 = scmp.eq.s32.totalorder %s23, 0
      %p247 = por %p245, %p246
      %p248 = scmp.ne.s32.totalorder %s237, %s240
      %p249 = scmp.eq.s32.totalorder %s28, 1
      %p250 = por %p248, %p249
      %p251 = scmp.ne.s32.totalorder %s240, %s241
      %p252 = scmp.eq.s32.totalorder %s28, 0
      %p253 = por %p251, %p252
      %p254 = scmp.ne.s32.totalorder %s240, %s241
      %p255 = scmp.eq.s32.totalorder %s29, 1
      %p256 = por %p254, %p255
      %p258 = scmp.ne.s32.totalorder %s241, %s257
      %p259 = scmp.eq.s32.totalorder %s29, 0
      %p260 = por %p258, %p259
      %s261 = ssub.s32 %s23, %s30
      %p262 = scmp.eq.s32.totalorder %s261, 0
      %s264 = sadd.s32 %s263, 1
      %s265 = scalar_select %p262, %s263, %s264
      %p268 = pneg %p262
      %p269 = scmp.eq.s32.totalorder %s23, 1
      %p270 = por %p268, %p269
      %p271 = scmp.ne.s32.totalorder %s263, %s266
      %p272 = scmp.eq.s32.totalorder %s23, 0
      %p273 = por %p271, %p272
      %p274 = scmp.ne.s32.totalorder %s263, %s266
      %p275 = scmp.eq.s32.totalorder %s28, 1
      %p276 = por %p274, %p275
      %p277 = scmp.ne.s32.totalorder %s266, %s267
      %p278 = scmp.eq.s32.totalorder %s28, 0
      %p279 = por %p277, %p278
      %p280 = scmp.ne.s32.totalorder %s266, %s267
      %p281 = scmp.eq.s32.totalorder %s29, 1
      %p282 = por %p280, %p281
      %p284 = scmp.ne.s32.totalorder %s267, %s283
      %p285 = scmp.eq.s32.totalorder %s29, 0
      %p286 = por %p284, %p285
      %s287 = ssub.s32 %s23, %s30
      %p288 = scmp.eq.s32.totalorder %s287, 0
      %s290 = sadd.s32 %s289, 1
      %s291 = scalar_select %p288, %s289, %s290
      %p294 = pneg %p288
      %p295 = scmp.eq.s32.totalorder %s23, 1
      %p296 = por %p294, %p295
      %p297 = scmp.ne.s32.totalorder %s289, %s292
      %p298 = scmp.eq.s32.totalorder %s23, 0
      %p299 = por %p297, %p298
      %p300 = scmp.ne.s32.totalorder %s289, %s292
      %p301 = scmp.eq.s32.totalorder %s28, 1
      %p302 = por %p300, %p301
      %p303 = scmp.ne.s32.totalorder %s292, %s293
      %p304 = scmp.eq.s32.totalorder %s28, 0
      %p305 = por %p303, %p304
      %p306 = scmp.ne.s32.totalorder %s292, %s293
      %p307 = scmp.eq.s32.totalorder %s29, 1
      %p308 = por %p306, %p307
      %p310 = scmp.ne.s32.totalorder %s293, %s309
      %p311 = scmp.eq.s32.totalorder %s29, 0
      %p312 = por %p310, %p311
      %s313 = ssub.s32 %s23, %s30
      %p314 = scmp.eq.s32.totalorder %s313, 0
      %s316 = sadd.s32 %s315, 1
      %s317 = scalar_select %p314, %s315, %s316
      %p320 = pneg %p314
      %p321 = scmp.eq.s32.totalorder %s23, 1
      %p322 = por %p320, %p321
      %p323 = scmp.ne.s32.totalorder %s315, %s318
      %p324 = scmp.eq.s32.totalorder %s23, 0
      %p325 = por %p323, %p324
      %p326 = scmp.ne.s32.totalorder %s315, %s318
      %p327 = scmp.eq.s32.totalorder %s28, 1
      %p328 = por %p326, %p327
      %p329 = scmp.ne.s32.totalorder %s318, %s319
      %p330 = scmp.eq.s32.totalorder %s28, 0
      %p331 = por %p329, %p330
      %p332 = scmp.ne.s32.totalorder %s318, %s319
      %p333 = scmp.eq.s32.totalorder %s29, 1
      %p334 = por %p332, %p333
      %p336 = scmp.ne.s32.totalorder %s319, %s335
      %p337 = scmp.eq.s32.totalorder %s29, 0
      %p338 = por %p336, %p337
      %s339 = ssub.s32 %s23, %s30
      %p340 = scmp.eq.s32.totalorder %s339, 0
      %s342 = sadd.s32 %s341, 1
      %s343 = scalar_select %p340, %s341, %s342
      %p346 = pneg %p340
      %p347 = scmp.eq.s32.totalorder %s23, 1
      %p348 = por %p346, %p347
      %p349 = scmp.ne.s32.totalorder %s341, %s344
      %p350 = scmp.eq.s32.totalorder %s23, 0
      %p351 = por %p349, %p350
      %p352 = scmp.ne.s32.totalorder %s341, %s344
      %p353 = scmp.eq.s32.totalorder %s28, 1
      %p354 = por %p352, %p353
      %p355 = scmp.ne.s32.totalorder %s344, %s345
      %p356 = scmp.eq.s32.totalorder %s28, 0
      %p357 = por %p355, %p356
      %p358 = scmp.ne.s32.totalorder %s344, %s345
      %p359 = scmp.eq.s32.totalorder %s29, 1
      %p360 = por %p358, %p359
      %p362 = scmp.ne.s32.totalorder %s345, %s361
      %p363 = scmp.eq.s32.totalorder %s29, 0
      %p364 = por %p362, %p363
      %s365 = ssub.s32 %s23, %s30
      %p366 = scmp.eq.s32.totalorder %s365, 0
      %s368 = sadd.s32 %s367, 1
      %s369 = scalar_select %p366, %s367, %s368
      %p372 = pneg %p366
      %p373 = scmp.eq.s32.totalorder %s23, 1
      %p374 = por %p372, %p373
      %p375 = scmp.ne.s32.totalorder %s367, %s370
      %p376 = scmp.eq.s32.totalorder %s23, 0
      %p377 = por %p375, %p376
      %p378 = scmp.ne.s32.totalorder %s367, %s370
      %p379 = scmp.eq.s32.totalorder %s28, 1
      %p380 = por %p378, %p379
      %p381 = scmp.ne.s32.totalorder %s370, %s371
      %p382 = scmp.eq.s32.totalorder %s28, 0
      %p383 = por %p381, %p382
      %p384 = scmp.ne.s32.totalorder %s370, %s371
      %p385 = scmp.eq.s32.totalorder %s29, 1
      %p386 = por %p384, %p385
      %p388 = scmp.ne.s32.totalorder %s371, %s387
      %p389 = scmp.eq.s32.totalorder %s29, 0
      %p390 = por %p388, %p389
      %s392 = sadd.s32 %s391, 1
      %p395 = scmp.eq.s32.totalorder %s23, 1
      %p396 = scmp.ne.s32.totalorder %s391, %s393
      %p397 = scmp.eq.s32.totalorder %s23, 0
      %p398 = por %p396, %p397
      %p399 = scmp.ne.s32.totalorder %s391, %s393
      %p400 = scmp.eq.s32.totalorder %s28, 1
      %p401 = por %p399, %p400
      %p402 = scmp.ne.s32.totalorder %s393, %s394
      %p403 = scmp.eq.s32.totalorder %s28, 0
      %p404 = por %p402, %p403
      %p405 = scmp.ne.s32.totalorder %s393, %s394
      %p406 = scmp.eq.s32.totalorder %s29, 1
      %p407 = por %p405, %p406
      %p409 = scmp.ne.s32.totalorder %s394, %s408
      %p410 = scmp.eq.s32.totalorder %s29, 0
      %p411 = por %p409, %p410
      %s413 = sadd.s32 %s412, 1
      %p416 = scmp.eq.s32.totalorder %s23, 1
      %p417 = scmp.ne.s32.totalorder %s412, %s414
      %p418 = scmp.eq.s32.totalorder %s23, 0
      %p419 = por %p417, %p418
      %p420 = scmp.ne.s32.totalorder %s412, %s414
      %p421 = scmp.eq.s32.totalorder %s28, 1
      %p422 = por %p420, %p421
      %p423 = scmp.ne.s32.totalorder %s414, %s415
      %p424 = scmp.eq.s32.totalorder %s28, 0
      %p425 = por %p423, %p424
      %p426 = scmp.ne.s32.totalorder %s414, %s415
      %p427 = scmp.eq.s32.totalorder %s29, 1
      %p428 = por %p426, %p427
      %p430 = scmp.ne.s32.totalorder %s415, %s429
      %p431 = scmp.eq.s32.totalorder %s29, 0
      %p432 = por %p430, %p431
      %p433 = scmp.le.s32.totalorder 1, %s23
      %p434 = scmp.lt.s32.totalorder %s23, 3
      %p435 = pnand %p433, %p434
      %p436 = pneg %p435
      // Predicated region
      $region9: #{tpu_custom_call.1} parent=5 // pred_check
        _
      $region10: #{tpu_custom_call.1} parent=5 // pred_check_branch
        %438 = sbr.rel (%p435) target = $region12
      $region11: #{tpu_custom_call.1} parent=5 // pred_region
        %s439 = ssub.s32 %s23, 1
        // Predicated region
        $region13: #{tpu_custom_call.1} parent=11 // pred_check
          %p440 = pneg %p44
        $region14: #{tpu_custom_call.1} parent=11 // pred_check_branch
          %442 = sbr.rel (%p440) target = $region16
        $region15: #{tpu_custom_call.1} parent=11 // pred_region
          _
        $region16: #{tpu_custom_call.1} parent=11 // pred_fallthru
          _
        // Predicated region
        $region17: #{tpu_custom_call.1} parent=11 // pred_check
          %p443 = pneg %p65
        $region18: #{tpu_custom_call.1} parent=11 // pred_check_branch
          %445 = sbr.rel (%p443) target = $region20
        $region19: #{tpu_custom_call.1} parent=11 // pred_region
          _
        $region20: #{tpu_custom_call.1} parent=11 // pred_fallthru
          _
        // Predicated region
        $region21: #{tpu_custom_call.1} parent=11 // pred_check
          %p446 = pneg %p86
        $region22: #{tpu_custom_call.1} parent=11 // pred_check_branch
          %448 = sbr.rel (%p446) target = $region24
        $region23: #{tpu_custom_call.1} parent=11 // pred_region
          _
        $region24: #{tpu_custom_call.1} parent=11 // pred_fallthru
          _
        // Predicated region
        $region25: #{tpu_custom_call.1} parent=11 // pred_check
          %p449 = pneg %p107
        $region26: #{tpu_custom_call.1} parent=11 // pred_check_branch
          %451 = sbr.rel (%p449) target = $region28
        $region27: #{tpu_custom_call.1} parent=11 // pred_region
          _
        $region28: #{tpu_custom_call.1} parent=11 // pred_fallthru
          _
        // Predicated region
        $region29: #{tpu_custom_call.1} parent=11 // pred_check
          %p452 = pneg %p128
        $region30: #{tpu_custom_call.1} parent=11 // pred_check_branch
          %454 = sbr.rel (%p452) target = $region32
        $region31: #{tpu_custom_call.1} parent=11 // pred_region
          _
        $region32: #{tpu_custom_call.1} parent=11 // pred_fallthru
          _
        // Predicated region
        $region33: #{tpu_custom_call.1} parent=11 // pred_check
          %p455 = pneg %p149
        $region34: #{tpu_custom_call.1} parent=11 // pred_check_branch
          %457 = sbr.rel (%p455) target = $region36
        $region35: #{tpu_custom_call.1} parent=11 // pred_region
          _
        $region36: #{tpu_custom_call.1} parent=11 // pred_fallthru
          _
        // Predicated region
        $region37: #{tpu_custom_call.1} parent=11 // pred_check
          %p458 = pneg %p404
        $region38: #{tpu_custom_call.1} parent=11 // pred_check_branch
          %460 = sbr.rel (%p458) target = $region40
        $region39: #{tpu_custom_call.1} parent=11 // pred_region
          _
        $region40: #{tpu_custom_call.1} parent=11 // pred_fallthru
          _
      $region12: #{tpu_custom_call.1} parent=5 // pred_fallthru
        _
      %p461 = scmp.lt.s32.totalorder %s23, 2
      // Predicated region
      $region41: #{tpu_custom_call.1} parent=5 // pred_check
        %p462 = pneg %p461
      $region42: #{tpu_custom_call.1} parent=5 // pred_check_branch
        %464 = sbr.rel (%p462) target = $region44
      $region43: #{tpu_custom_call.1} parent=5 // pred_region
        // Predicated region
        $region45: #{tpu_custom_call.1} parent=43 // pred_check
          %p465 = pneg %p169
        $region46: #{tpu_custom_call.1} parent=43 // pred_check_branch
          %467 = sbr.rel (%p465) target = $region48
        $region47: #{tpu_custom_call.1} parent=43 // pred_region
          %p468 = scmp.lt.s32.totalorder %s23, 1
          %s469 = scalar_select %p468, %s23, 1
          %s470 = scalar_lea.vmem %s6, %s469
        $region48: #{tpu_custom_call.1} parent=43 // pred_fallthru
          _
        // Predicated region
        $region49: #{tpu_custom_call.1} parent=43 // pred_check
          %p471 = pneg %p195
        $region50: #{tpu_custom_call.1} parent=43 // pred_check_branch
          %473 = sbr.rel (%p471) target = $region52
        $region51: #{tpu_custom_call.1} parent=43 // pred_region
          %p474 = scmp.lt.s32.totalorder %s23, 1
          %s475 = scalar_select %p474, %s23, 1
          %s476 = scalar_lea.vmem %s7, %s475
        $region52: #{tpu_custom_call.1} parent=43 // pred_fallthru
          _
        // Predicated region
        $region53: #{tpu_custom_call.1} parent=43 // pred_check
          %p477 = pneg %p221
        $region54: #{tpu_custom_call.1} parent=43 // pred_check_branch
          %479 = sbr.rel (%p477) target = $region56
        $region55: #{tpu_custom_call.1} parent=43 // pred_region
          %p480 = scmp.lt.s32.totalorder %s23, 1
          %s481 = scalar_select %p480, %s23, 1
          %s482 = smul.addr %s481, 16
          %s483 = smul.addr %s482, 4
          %s484 = scalar_lea.vmem %s8, %s483
        $region56: #{tpu_custom_call.1} parent=43 // pred_fallthru
          _
        // Predicated region
        $region57: #{tpu_custom_call.1} parent=43 // pred_check
          %p485 = pneg %p247
        $region58: #{tpu_custom_call.1} parent=43 // pred_check_branch
          %487 = sbr.rel (%p485) target = $region60
        $region59: #{tpu_custom_call.1} parent=43 // pred_region
          %p488 = scmp.lt.s32.totalorder %s23, 1
          %s489 = scalar_select %p488, %s23, 1
          %s490 = smul.addr %s489, 4
          %s491 = smul.addr %s490, 4
          %s492 = scalar_lea.vmem %s9, %s491
        $region60: #{tpu_custom_call.1} parent=43 // pred_fallthru
          _
        // Predicated region
        $region61: #{tpu_custom_call.1} parent=43 // pred_check
          %p493 = pneg %p273
        $region62: #{tpu_custom_call.1} parent=43 // pred_check_branch
          %495 = sbr.rel (%p493) target = $region64
        $region63: #{tpu_custom_call.1} parent=43 // pred_region
          %p496 = scmp.lt.s32.totalorder %s23, 1
          %s497 = scalar_select %p496, %s23, 1
          %s498 = smul.addr %s497, 4
          %s499 = smul.addr %s498, 4
          %s500 = scalar_lea.vmem %s10, %s499
        $region64: #{tpu_custom_call.1} parent=43 // pred_fallthru
          _
        // Predicated region
        $region65: #{tpu_custom_call.1} parent=43 // pred_check
          %p501 = pneg %p299
        $region66: #{tpu_custom_call.1} parent=43 // pred_check_branch
          %503 = sbr.rel (%p501) target = $region68
        $region67: #{tpu_custom_call.1} parent=43 // pred_region
          %p504 = scmp.lt.s32.totalorder %s23, 1
          %s505 = scalar_select %p504, %s23, 1
          %s506 = smul.addr %s505, 4
          %s507 = smul.addr %s506, 4
          %s508 = scalar_lea.vmem %s11, %s507
        $region68: #{tpu_custom_call.1} parent=43 // pred_fallthru
          _
        // Predicated region
        $region69: #{tpu_custom_call.1} parent=43 // pred_check
          %p509 = pneg %p325
        $region70: #{tpu_custom_call.1} parent=43 // pred_check_branch
          %511 = sbr.rel (%p509) target = $region72
        $region71: #{tpu_custom_call.1} parent=43 // pred_region
          %p512 = scmp.lt.s32.totalorder %s23, 1
          %s513 = scalar_select %p512, %s23, 1
          %s514 = smul.addr %s513, 8
          %s515 = smul.addr %s514, 4
          %s516 = scalar_lea.vmem %s12, %s515
        $region72: #{tpu_custom_call.1} parent=43 // pred_fallthru
          _
        // Predicated region
        $region73: #{tpu_custom_call.1} parent=43 // pred_check
          %p517 = pneg %p351
        $region74: #{tpu_custom_call.1} parent=43 // pred_check_branch
          %519 = sbr.rel (%p517) target = $region76
        $region75: #{tpu_custom_call.1} parent=43 // pred_region
          %p520 = scmp.lt.s32.totalorder %s23, 1
          %s521 = scalar_select %p520, %s23, 1
          %s522 = smul.addr %s521, 2
          %s523 = smul.addr %s522, 4
          %s524 = scalar_lea.vmem %s13, %s523
        $region76: #{tpu_custom_call.1} parent=43 // pred_fallthru
          _
        // Predicated region
        $region77: #{tpu_custom_call.1} parent=43 // pred_check
          %p525 = pneg %p377
        $region78: #{tpu_custom_call.1} parent=43 // pred_check_branch
          %527 = sbr.rel (%p525) target = $region80
        $region79: #{tpu_custom_call.1} parent=43 // pred_region
          %p528 = scmp.lt.s32.totalorder %s23, 1
          %s529 = scalar_select %p528, %s23, 1
          %s530 = smul.addr %s529, 32
          %s531 = smul.addr %s530, 4
          %s532 = scalar_lea.vmem %s14, %s531
        $region80: #{tpu_custom_call.1} parent=43 // pred_fallthru
          _
      $region44: #{tpu_custom_call.1} parent=5 // pred_fallthru
        _
      %p533 = scmp.le.s32.totalorder 1, %s23
      %p534 = scmp.lt.s32.totalorder %s23, 3
      %p535 = pnand %p533, %p534
      %p536 = pneg %p535
      // Predicated region
      $region81: #{tpu_custom_call.1} parent=5 // pred_check
        _
      $region82: #{tpu_custom_call.1} parent=5 // pred_check_branch
        %538 = sbr.rel (%p535) target = $region84
      $region83: #{tpu_custom_call.1} parent=5 // pred_region
        %s539 = ssub.s32 %s23, 1
        %p540 = pneg %p44
        %p541 = pneg %p41
        %p542 = pneg %p65
        %p543 = pneg %p62
        %p544 = pneg %p86
        %p545 = pneg %p83
        %p546 = pneg %p107
        %p547 = pneg %p104
        %p548 = pneg %p128
        %p549 = pneg %p125
        %p550 = pneg %p149
        %p551 = pneg %p146
        %p552 = scmp.lt.s32.totalorder %s28, 1
        %s553 = scalar_select %p552, %s28, 1
        %s554 = scalar_lea.vmem %s6, %s553
        %p555 = pneg %p175
        %p556 = pneg %p172
        %p557 = scmp.lt.s32.totalorder %s28, 1
        %s558 = scalar_select %p557, %s28, 1
        %s559 = scalar_lea.vmem %s7, %s558
        %p560 = pneg %p201
        %p561 = pneg %p198
        %p562 = scmp.lt.s32.totalorder %s28, 1
        %s563 = scalar_select %p562, %s28, 1
        %s564 = smul.addr %s563, 16
        %s565 = smul.addr %s564, 4
        %s566 = scalar_lea.vmem %s8, %s565
        %p567 = pneg %p227
        %p568 = pneg %p224
        %p569 = scmp.lt.s32.totalorder %s28, 1
        %s570 = scalar_select %p569, %s28, 1
        %s571 = smul.addr %s570, 4
        %s572 = smul.addr %s571, 4
        %s573 = scalar_lea.vmem %s9, %s572
        %p574 = pneg %p253
        %p575 = pneg %p250
        %p576 = scmp.lt.s32.totalorder %s28, 1
        %s577 = scalar_select %p576, %s28, 1
        %s578 = smul.addr %s577, 4
        %s579 = smul.addr %s578, 4
        %s580 = scalar_lea.vmem %s10, %s579
        %p581 = pneg %p279
        %p582 = pneg %p276
        %p583 = scmp.lt.s32.totalorder %s28, 1
        %s584 = scalar_select %p583, %s28, 1
        %s585 = smul.addr %s584, 4
        %s586 = smul.addr %s585, 4
        %s587 = scalar_lea.vmem %s11, %s586
        %p588 = pneg %p305
        %p589 = pneg %p302
        %p590 = scmp.lt.s32.totalorder %s28, 1
        %s591 = scalar_select %p590, %s28, 1
        %s592 = smul.addr %s591, 8
        %s593 = smul.addr %s592, 4
        %s594 = scalar_lea.vmem %s12, %s593
        %p595 = pneg %p331
        %p596 = pneg %p328
        %p597 = scmp.lt.s32.totalorder %s28, 1
        %s598 = scalar_select %p597, %s28, 1
        %s599 = smul.addr %s598, 2
        %s600 = smul.addr %s599, 4
        %s601 = scalar_lea.vmem %s13, %s600
        %p602 = pneg %p357
        %p603 = pneg %p354
        %p604 = scmp.lt.s32.totalorder %s28, 1
        %s605 = scalar_select %p604, %s28, 1
        %s606 = smul.addr %s605, 32
        %s607 = smul.addr %s606, 4
        %s608 = scalar_lea.vmem %s14, %s607
        %p609 = pneg %p383
        %p610 = pneg %p380
        %p611 = pneg %p404
        %p612 = pneg %p401
        %p613 = pneg %p425
        %p614 = pneg %p422
        %p615 = scmp.lt.s32.totalorder %s28, 1
        %s616 = scalar_select %p615, %s28, 1
        %s617 = scalar_lea.vmem %s6, %s616
        %p618 = scmp.lt.s32.totalorder %s28, 1
        %s619 = scalar_select %p618, %s28, 1
        %s620 = scalar_lea.vmem %s7, %s619
        %p621 = scmp.lt.s32.totalorder %s28, 1
        %s622 = scalar_select %p621, %s28, 1
        %s623 = smul.addr %s622, 16
        %s624 = smul.addr %s623, 4
        %s625 = scalar_lea.vmem %s8, %s624
        %p626 = scmp.lt.s32.totalorder %s28, 1
        %s627 = scalar_select %p626, %s28, 1
        %s628 = smul.addr %s627, 4
        %s629 = smul.addr %s628, 4
        %s630 = scalar_lea.vmem %s9, %s629
        %p631 = scmp.lt.s32.totalorder %s28, 1
        %s632 = scalar_select %p631, %s28, 1
        %s633 = smul.addr %s632, 4
        %s634 = smul.addr %s633, 4
        %s635 = scalar_lea.vmem %s10, %s634
        %p636 = scmp.lt.s32.totalorder %s28, 1
        %s637 = scalar_select %p636, %s28, 1
        %s638 = smul.addr %s637, 4
        %s639 = smul.addr %s638, 4
        %s640 = scalar_lea.vmem %s11, %s639
        %p641 = scmp.lt.s32.totalorder %s28, 1
        %s642 = scalar_select %p641, %s28, 1
        %s643 = smul.addr %s642, 8
        %s644 = smul.addr %s643, 4
        %s645 = scalar_lea.vmem %s12, %s644
        %p646 = scmp.lt.s32.totalorder %s28, 1
        %s647 = scalar_select %p646, %s28, 1
        %s648 = smul.addr %s647, 2
        %s649 = smul.addr %s648, 4
        %s650 = scalar_lea.vmem %s13, %s649
        %p651 = scmp.lt.s32.totalorder %s28, 1
        %s652 = scalar_select %p651, %s28, 1
        %s653 = smul.addr %s652, 32
        %s654 = smul.addr %s653, 4
        %s655 = scalar_lea.vmem %s14, %s654
        %p657 = scmp.eq.s32.totalorder %s28, 0
        // Predicated region
        $region85: #{tpu_custom_call.1} parent=83 // pred_check
          %p658 = pneg %p657
        $region86: #{tpu_custom_call.1} parent=83 // pred_check_branch
          %660 = sbr.rel (%p658) target = $region88
        $region87: #{tpu_custom_call.1} parent=83 // pred_region
          %v661 = vld [vmem:[%s0] sm:$0xff]
          %vm662 = vcmask 261120
          %663 = vst.msk [vmem:[#allocation2] sm:$0xff] %vm662, %v661
          %v664 = vld [vmem:[%s1] sm:$0xff]
          %665 = vst.msk [vmem:[#allocation3] sm:$0xff] %vm662, %v664
        $region88: #{tpu_custom_call.1} parent=83 // pred_fallthru
          _
        %v666 = vld [vmem:[#allocation2] sm:$0xff]
        %v667 = vld [vmem:[#allocation3] sm:$0xff]
        %v668 = vadd.f32 %v666, %v667
        %v669 = vld [vmem:[%s617] sm:$0x1]
        %v670 = vmul.f32 %v668, %v668
        %vm671 = vcmask 261120
        %v672 = vsel %vm671, %v670, 0.0
        %673 = vadd.xlane.f32.xlu0 %v672
        %v674 = vpop.xlane.xlu0 %673
        %v675 = vrcp.pop 32.0
        %v676 = vmul.f32 %v674, %v675
        %v677 = vadd.f32 %v676, 1e-06
        %v678 = vrsqrt.pop %v677
        %v679 = vmul.f32 %v668, %v678
        %v681 = vlaneseq
        %v682 = vshrl.u32 %v681, 7
        %v683 = vsub.s32 0, %v682
        %v684 = vrot.slane %v669, %v683
        %v686 = vmul.f32 %v679, %v684
        %v687 = vpack.c.bf16 %v686, %v686
        %v688 = vld [vmem:[%s2] sm:$0xff]
        %v689 = vld [vmem:[%s3] sm:$0xff]
        %v690 = vld [vmem:[%s625] sm:$0xf]
        %v691 = vld [vmem:[%s625 + $0x4] sm:$0xf]
        %v692 = vld [vmem:[%s625 + $0x8] sm:$0xf]
        %v693 = vld [vmem:[%s625 + $0xc] sm:$0xf]
        %v698 = vunpack.c.l.b16 %v690
        %v699 = vunpack.c.l.b16 %v691
        %v700 = vunpack.c.l.b16 %v692
        %v701 = vunpack.c.l.b16 %v693
        %v702 = vpack.c.b16 %v699, %v698
        %v703 = vpack.c.b16 %v701, %v700
        %v707 = vsel %vm671, %v687, 0
        %709 = vmatprep.subr.bf16.mxu0 0
        %710 = vmatpush1.bf16.msra.mxu0 0
        %711 = vmatprep.subr.bf16.mxu0 0
        %712 = vmatpush1.bf16.msra.mxu0 0
        %713 = vmatprep.subr.bf16.mxu0 0
        %714 = vmatpush1.bf16.msra.mxu0 0
        %715 = vmatprep.subr.bf16.mxu0 0
        %716 = vmatpush1.bf16.msra.mxu0 0
        %717 = vmatprep.subr.bf16.mxu0 0
        %718 = vmatpush1.bf16.msra.mxu0 0
        %719 = vmatprep.subr.bf16.mxu0 0
        %720 = vmatpush1.bf16.msra.mxu0 0
        %721 = vmatprep.subr.bf16.mxu0 0
        %722 = vmatpush1.bf16.msra.mxu0 %v703
        %723 = vmatprep.subr.bf16.mxu0 0
        %724 = vmatpush1.bf16.msra.mxu0 %v702
        %725 = vmatprep.subr.bf16.mxu0 0
        %726 = vmatpush2.bf16.msra.mxu0 0
        %727 = vmatprep.subr.bf16.mxu0 0
        %728 = vmatpush2.bf16.msra.mxu0 0
        %729 = vmatprep.subr.bf16.mxu0 0
        %730 = vmatpush2.bf16.msra.mxu0 0
        %731 = vmatprep.subr.bf16.mxu0 0
        %732 = vmatpush2.bf16.msra.mxu0 0
        %733 = vmatprep.subr.bf16.mxu0 0
        %734 = vmatpush2.bf16.msra.mxu0 0
        %735 = vmatprep.subr.bf16.mxu0 0
        %736 = vmatpush2.bf16.msra.mxu0 0
        %737 = vmatprep.subr.bf16.mxu0 0
        %738 = vmatpush2.bf16.msra.mxu0 0
        %739 = vmatprep.subr.bf16.mxu0 0
        %740 = vmatpush2.bf16.msra.mxu0 0
        %741 = vmatprep.mubr.bf16.mxu0 0
        %742 = vmatmul.mubr.bf16.gmra.mxu0 %v707
        %v743 = vpop.f32.mrf.mxu0
        %v744 = vadd.f32 0.0, %v743
        %v745 = vpop.f32.mrf.mxu0
        %v746 = vpop.f32.mrf.mxu0
        %v747 = vpop.f32.mrf.mxu0
        %748 = vdwg.mxu0
        %v749 = vpack.c.bf16 %v744, %v744
        %v750 = vld [vmem:[%s4] sm:$0xf]
        %vm751 = vcmask 64512
        %v753 = vsel %vm751, %v749, 0
        %vm755 = vcmask 1043456
        %v757 = vsel %vm755, %v750, 0
        %759 = vmatprep.subr.bf16.mxu0 0
        %760 = vmatpush1.bf16.msra.mxu0 0
        %761 = vmatprep.subr.bf16.mxu0 0
        %762 = vmatpush1.bf16.msra.mxu0 0
        %763 = vmatprep.subr.bf16.mxu0 0
        %764 = vmatpush1.bf16.msra.mxu0 0
        %765 = vmatprep.subr.bf16.mxu0 0
        %766 = vmatpush1.bf16.msra.mxu0 0
        %767 = vmatprep.subr.bf16.mxu0 0
        %768 = vmatpush1.bf16.msra.mxu0 0
        %769 = vmatprep.subr.bf16.mxu0 0
        %770 = vmatpush1.bf16.msra.mxu0 0
        %771 = vmatprep.subr.bf16.mxu0 0
        %772 = vmatpush1.bf16.msra.mxu0 0
        %773 = vmatprep.subr.bf16.mxu0 0
        %774 = vmatpush1.bf16.msra.mxu0 %v757
        %775 = vmatprep.subr.bf16.mxu0 0
        %776 = vmatpush2.bf16.msra.mxu0 0
        %777 = vmatprep.subr.bf16.mxu0 0
        %778 = vmatpush2.bf16.msra.mxu0 0
        %779 = vmatprep.subr.bf16.mxu0 0
        %780 = vmatpush2.bf16.msra.mxu0 0
        %781 = vmatprep.subr.bf16.mxu0 0
        %782 = vmatpush2.bf16.msra.mxu0 0
        %783 = vmatprep.subr.bf16.mxu0 0
        %784 = vmatpush2.bf16.msra.mxu0 0
        %785 = vmatprep.subr.bf16.mxu0 0
        %786 = vmatpush2.bf16.msra.mxu0 0
        %787 = vmatprep.subr.bf16.mxu0 0
        %788 = vmatpush2.bf16.msra.mxu0 0
        %789 = vmatprep.subr.bf16.mxu0 0
        %790 = vmatpush2.bf16.msra.mxu0 0
        %791 = vmatprep.mubr.bf16.mxu0 0
        %792 = vmatmul.mubr.bf16.gmra.mxu0 %v753
        %v793 = vpop.f32.mrf.mxu0
        %v794 = vadd.f32 0.0, %v793
        %v795 = vpop.f32.mrf.mxu0
        %v796 = vpop.f32.mrf.mxu0
        %v797 = vpop.f32.mrf.mxu0
        %798 = vdwg.mxu0
        %v799 = vmul.f32 %v744, %v688
        %v800 = vmul.f32 %v794, %v689
        %v801 = vadd.f32 %v799, %v800
        %802 = vst.msk [vmem:[#allocation4] sm:$0xff] %vm751, %v801
        %s803 = scalar_lea.vmem %s625, 16
        %v804 = vld [vmem:[%s803] sm:$0xf]
        %v805 = vld [vmem:[%s803 + $0x4] sm:$0xf]
        %v806 = vld [vmem:[%s803 + $0x8] sm:$0xf]
        %v807 = vld [vmem:[%s803 + $0xc] sm:$0xf]
        %v812 = vunpack.c.l.b16 %v804
        %v813 = vunpack.c.l.b16 %v805
        %v814 = vunpack.c.l.b16 %v806
        %v815 = vunpack.c.l.b16 %v807
        %v816 = vpack.c.b16 %v813, %v812
        %v817 = vpack.c.b16 %v815, %v814
        %820 = vmatprep.subr.bf16.mxu0 0
        %821 = vmatpush1.bf16.msra.mxu0 0
        %822 = vmatprep.subr.bf16.mxu0 0
        %823 = vmatpush1.bf16.msra.mxu0 0
        %824 = vmatprep.subr.bf16.mxu0 0
        %825 = vmatpush1.bf16.msra.mxu0 0
        %826 = vmatprep.subr.bf16.mxu0 0
        %827 = vmatpush1.bf16.msra.mxu0 0
        %828 = vmatprep.subr.bf16.mxu0 0
        %829 = vmatpush1.bf16.msra.mxu0 0
        %830 = vmatprep.subr.bf16.mxu0 0
        %831 = vmatpush1.bf16.msra.mxu0 0
        %832 = vmatprep.subr.bf16.mxu0 0
        %833 = vmatpush1.bf16.msra.mxu0 %v817
        %834 = vmatprep.subr.bf16.mxu0 0
        %835 = vmatpush1.bf16.msra.mxu0 %v816
        %836 = vmatprep.subr.bf16.mxu0 0
        %837 = vmatpush2.bf16.msra.mxu0 0
        %838 = vmatprep.subr.bf16.mxu0 0
        %839 = vmatpush2.bf16.msra.mxu0 0
        %840 = vmatprep.subr.bf16.mxu0 0
        %841 = vmatpush2.bf16.msra.mxu0 0
        %842 = vmatprep.subr.bf16.mxu0 0
        %843 = vmatpush2.bf16.msra.mxu0 0
        %844 = vmatprep.subr.bf16.mxu0 0
        %845 = vmatpush2.bf16.msra.mxu0 0
        %846 = vmatprep.subr.bf16.mxu0 0
        %847 = vmatpush2.bf16.msra.mxu0 0
        %848 = vmatprep.subr.bf16.mxu0 0
        %849 = vmatpush2.bf16.msra.mxu0 0
        %850 = vmatprep.subr.bf16.mxu0 0
        %851 = vmatpush2.bf16.msra.mxu0 0
        %852 = vmatprep.mubr.bf16.mxu0 0
        %853 = vmatmul.mubr.bf16.gmra.mxu0 %v707
        %v854 = vpop.f32.mrf.mxu0
        %v855 = vadd.f32 0.0, %v854
        %v856 = vpop.f32.mrf.mxu0
        %v857 = vpop.f32.mrf.mxu0
        %v858 = vpop.f32.mrf.mxu0
        %859 = vdwg.mxu0
        %v860 = vpack.c.bf16 %v855, %v855
        %v861 = vld [vmem:[%s4] sm:$0xf]
        %v863 = vsel %vm751, %v860, 0
        %v866 = vsel %vm755, %v861, 0
        %868 = vmatprep.subr.bf16.mxu0 0
        %869 = vmatpush1.bf16.msra.mxu0 0
        %870 = vmatprep.subr.bf16.mxu0 0
        %871 = vmatpush1.bf16.msra.mxu0 0
        %872 = vmatprep.subr.bf16.mxu0 0
        %873 = vmatpush1.bf16.msra.mxu0 0
        %874 = vmatprep.subr.bf16.mxu0 0
        %875 = vmatpush1.bf16.msra.mxu0 0
        %876 = vmatprep.subr.bf16.mxu0 0
        %877 = vmatpush1.bf16.msra.mxu0 0
        %878 = vmatprep.subr.bf16.mxu0 0
        %879 = vmatpush1.bf16.msra.mxu0 0
        %880 = vmatprep.subr.bf16.mxu0 0
        %881 = vmatpush1.bf16.msra.mxu0 0
        %882 = vmatprep.subr.bf16.mxu0 0
        %883 = vmatpush1.bf16.msra.mxu0 %v866
        %884 = vmatprep.subr.bf16.mxu0 0
        %885 = vmatpush2.bf16.msra.mxu0 0
        %886 = vmatprep.subr.bf16.mxu0 0
        %887 = vmatpush2.bf16.msra.mxu0 0
        %888 = vmatprep.subr.bf16.mxu0 0
        %889 = vmatpush2.bf16.msra.mxu0 0
        %890 = vmatprep.subr.bf16.mxu0 0
        %891 = vmatpush2.bf16.msra.mxu0 0
        %892 = vmatprep.subr.bf16.mxu0 0
        %893 = vmatpush2.bf16.msra.mxu0 0
        %894 = vmatprep.subr.bf16.mxu0 0
        %895 = vmatpush2.bf16.msra.mxu0 0
        %896 = vmatprep.subr.bf16.mxu0 0
        %897 = vmatpush2.bf16.msra.mxu0 0
        %898 = vmatprep.subr.bf16.mxu0 0
        %899 = vmatpush2.bf16.msra.mxu0 0
        %900 = vmatprep.mubr.bf16.mxu0 0
        %901 = vmatmul.mubr.bf16.gmra.mxu0 %v863
        %v902 = vpop.f32.mrf.mxu0
        %v903 = vadd.f32 0.0, %v902
        %v904 = vpop.f32.mrf.mxu0
        %v905 = vpop.f32.mrf.mxu0
        %v906 = vpop.f32.mrf.mxu0
        %907 = vdwg.mxu0
        %v908 = vmul.f32 %v855, %v688
        %v909 = vmul.f32 %v903, %v689
        %v910 = vadd.f32 %v908, %v909
        %911 = vst.msk [vmem:[#allocation4 + $0x8] sm:$0xff] %vm751, %v910
        %s912 = scalar_lea.vmem %s625, 32
        %v913 = vld [vmem:[%s912] sm:$0xf]
        %v914 = vld [vmem:[%s912 + $0x4] sm:$0xf]
        %v915 = vld [vmem:[%s912 + $0x8] sm:$0xf]
        %v916 = vld [vmem:[%s912 + $0xc] sm:$0xf]
        %v921 = vunpack.c.l.b16 %v913
        %v922 = vunpack.c.l.b16 %v914
        %v923 = vunpack.c.l.b16 %v915
        %v924 = vunpack.c.l.b16 %v916
        %v925 = vpack.c.b16 %v922, %v921
        %v926 = vpack.c.b16 %v924, %v923
        %929 = vmatprep.subr.bf16.mxu0 0
        %930 = vmatpush1.bf16.msra.mxu0 0
        %931 = vmatprep.subr.bf16.mxu0 0
        %932 = vmatpush1.bf16.msra.mxu0 0
        %933 = vmatprep.subr.bf16.mxu0 0
        %934 = vmatpush1.bf16.msra.mxu0 0
        %935 = vmatprep.subr.bf16.mxu0 0
        %936 = vmatpush1.bf16.msra.mxu0 0
        %937 = vmatprep.subr.bf16.mxu0 0
        %938 = vmatpush1.bf16.msra.mxu0 0
        %939 = vmatprep.subr.bf16.mxu0 0
        %940 = vmatpush1.bf16.msra.mxu0 0
        %941 = vmatprep.subr.bf16.mxu0 0
        %942 = vmatpush1.bf16.msra.mxu0 %v926
        %943 = vmatprep.subr.bf16.mxu0 0
        %944 = vmatpush1.bf16.msra.mxu0 %v925
        %945 = vmatprep.subr.bf16.mxu0 0
        %946 = vmatpush2.bf16.msra.mxu0 0
        %947 = vmatprep.subr.bf16.mxu0 0
        %948 = vmatpush2.bf16.msra.mxu0 0
        %949 = vmatprep.subr.bf16.mxu0 0
        %950 = vmatpush2.bf16.msra.mxu0 0
        %951 = vmatprep.subr.bf16.mxu0 0
        %952 = vmatpush2.bf16.msra.mxu0 0
        %953 = vmatprep.subr.bf16.mxu0 0
        %954 = vmatpush2.bf16.msra.mxu0 0
        %955 = vmatprep.subr.bf16.mxu0 0
        %956 = vmatpush2.bf16.msra.mxu0 0
        %957 = vmatprep.subr.bf16.mxu0 0
        %958 = vmatpush2.bf16.msra.mxu0 0
        %959 = vmatprep.subr.bf16.mxu0 0
        %960 = vmatpush2.bf16.msra.mxu0 0
        %961 = vmatprep.mubr.bf16.mxu0 0
        %962 = vmatmul.mubr.bf16.gmra.mxu0 %v707
        %v963 = vpop.f32.mrf.mxu0
        %v964 = vadd.f32 0.0, %v963
        %v965 = vpop.f32.mrf.mxu0
        %v966 = vpop.f32.mrf.mxu0
        %v967 = vpop.f32.mrf.mxu0
        %968 = vdwg.mxu0
        %v969 = vpack.c.bf16 %v964, %v964
        %v970 = vld [vmem:[%s4] sm:$0xf]
        %v972 = vsel %vm751, %v969, 0
        %v975 = vsel %vm755, %v970, 0
        %977 = vmatprep.subr.bf16.mxu0 0
        %978 = vmatpush1.bf16.msra.mxu0 0
        %979 = vmatprep.subr.bf16.mxu0 0
        %980 = vmatpush1.bf16.msra.mxu0 0
        %981 = vmatprep.subr.bf16.mxu0 0
        %982 = vmatpush1.bf16.msra.mxu0 0
        %983 = vmatprep.subr.bf16.mxu0 0
        %984 = vmatpush1.bf16.msra.mxu0 0
        %985 = vmatprep.subr.bf16.mxu0 0
        %986 = vmatpush1.bf16.msra.mxu0 0
        %987 = vmatprep.subr.bf16.mxu0 0
        %988 = vmatpush1.bf16.msra.mxu0 0
        %989 = vmatprep.subr.bf16.mxu0 0
        %990 = vmatpush1.bf16.msra.mxu0 0
        %991 = vmatprep.subr.bf16.mxu0 0
        %992 = vmatpush1.bf16.msra.mxu0 %v975
        %993 = vmatprep.subr.bf16.mxu0 0
        %994 = vmatpush2.bf16.msra.mxu0 0
        %995 = vmatprep.subr.bf16.mxu0 0
        %996 = vmatpush2.bf16.msra.mxu0 0
        %997 = vmatprep.subr.bf16.mxu0 0
        %998 = vmatpush2.bf16.msra.mxu0 0
        %999 = vmatprep.subr.bf16.mxu0 0
        %1000 = vmatpush2.bf16.msra.mxu0 0
        %1001 = vmatprep.subr.bf16.mxu0 0
        %1002 = vmatpush2.bf16.msra.mxu0 0
        %1003 = vmatprep.subr.bf16.mxu0 0
        %1004 = vmatpush2.bf16.msra.mxu0 0
        %1005 = vmatprep.subr.bf16.mxu0 0
        %1006 = vmatpush2.bf16.msra.mxu0 0
        %1007 = vmatprep.subr.bf16.mxu0 0
        %1008 = vmatpush2.bf16.msra.mxu0 0
        %1009 = vmatprep.mubr.bf16.mxu0 0
        %1010 = vmatmul.mubr.bf16.gmra.mxu0 %v972
        %v1011 = vpop.f32.mrf.mxu0
        %v1012 = vadd.f32 0.0, %v1011
        %v1013 = vpop.f32.mrf.mxu0
        %v1014 = vpop.f32.mrf.mxu0
        %v1015 = vpop.f32.mrf.mxu0
        %1016 = vdwg.mxu0
        %v1017 = vmul.f32 %v964, %v688
        %v1018 = vmul.f32 %v1012, %v689
        %v1019 = vadd.f32 %v1017, %v1018
        %1020 = vst.msk [vmem:[#allocation4 + $0x10] sm:$0xff] %vm751, %v1019
        %s1021 = scalar_lea.vmem %s625, 48
        %v1022 = vld [vmem:[%s1021] sm:$0xf]
        %v1023 = vld [vmem:[%s1021 + $0x4] sm:$0xf]
        %v1024 = vld [vmem:[%s1021 + $0x8] sm:$0xf]
        %v1025 = vld [vmem:[%s1021 + $0xc] sm:$0xf]
        %v1030 = vunpack.c.l.b16 %v1022
        %v1031 = vunpack.c.l.b16 %v1023
        %v1032 = vunpack.c.l.b16 %v1024
        %v1033 = vunpack.c.l.b16 %v1025
        %v1034 = vpack.c.b16 %v1031, %v1030
        %v1035 = vpack.c.b16 %v1033, %v1032
        %1038 = vmatprep.subr.bf16.mxu0 0
        %1039 = vmatpush1.bf16.msra.mxu0 0
        %1040 = vmatprep.subr.bf16.mxu0 0
        %1041 = vmatpush1.bf16.msra.mxu0 0
        %1042 = vmatprep.subr.bf16.mxu0 0
        %1043 = vmatpush1.bf16.msra.mxu0 0
        %1044 = vmatprep.subr.bf16.mxu0 0
        %1045 = vmatpush1.bf16.msra.mxu0 0
        %1046 = vmatprep.subr.bf16.mxu0 0
        %1047 = vmatpush1.bf16.msra.mxu0 0
        %1048 = vmatprep.subr.bf16.mxu0 0
        %1049 = vmatpush1.bf16.msra.mxu0 0
        %1050 = vmatprep.subr.bf16.mxu0 0
        %1051 = vmatpush1.bf16.msra.mxu0 %v1035
        %1052 = vmatprep.subr.bf16.mxu0 0
        %1053 = vmatpush1.bf16.msra.mxu0 %v1034
        %1054 = vmatprep.subr.bf16.mxu0 0
        %1055 = vmatpush2.bf16.msra.mxu0 0
        %1056 = vmatprep.subr.bf16.mxu0 0
        %1057 = vmatpush2.bf16.msra.mxu0 0
        %1058 = vmatprep.subr.bf16.mxu0 0
        %1059 = vmatpush2.bf16.msra.mxu0 0
        %1060 = vmatprep.subr.bf16.mxu0 0
        %1061 = vmatpush2.bf16.msra.mxu0 0
        %1062 = vmatprep.subr.bf16.mxu0 0
        %1063 = vmatpush2.bf16.msra.mxu0 0
        %1064 = vmatprep.subr.bf16.mxu0 0
        %1065 = vmatpush2.bf16.msra.mxu0 0
        %1066 = vmatprep.subr.bf16.mxu0 0
        %1067 = vmatpush2.bf16.msra.mxu0 0
        %1068 = vmatprep.subr.bf16.mxu0 0
        %1069 = vmatpush2.bf16.msra.mxu0 0
        %1070 = vmatprep.mubr.bf16.mxu0 0
        %1071 = vmatmul.mubr.bf16.gmra.mxu0 %v707
        %v1072 = vpop.f32.mrf.mxu0
        %v1073 = vadd.f32 0.0, %v1072
        %v1074 = vpop.f32.mrf.mxu0
        %v1075 = vpop.f32.mrf.mxu0
        %v1076 = vpop.f32.mrf.mxu0
        %1077 = vdwg.mxu0
        %v1078 = vpack.c.bf16 %v1073, %v1073
        %v1079 = vld [vmem:[%s4] sm:$0xf]
        %v1081 = vsel %vm751, %v1078, 0
        %v1084 = vsel %vm755, %v1079, 0
        %1086 = vmatprep.subr.bf16.mxu0 0
        %1087 = vmatpush1.bf16.msra.mxu0 0
        %1088 = vmatprep.subr.bf16.mxu0 0
        %1089 = vmatpush1.bf16.msra.mxu0 0
        %1090 = vmatprep.subr.bf16.mxu0 0
        %1091 = vmatpush1.bf16.msra.mxu0 0
        %1092 = vmatprep.subr.bf16.mxu0 0
        %1093 = vmatpush1.bf16.msra.mxu0 0
        %1094 = vmatprep.subr.bf16.mxu0 0
        %1095 = vmatpush1.bf16.msra.mxu0 0
        %1096 = vmatprep.subr.bf16.mxu0 0
        %1097 = vmatpush1.bf16.msra.mxu0 0
        %1098 = vmatprep.subr.bf16.mxu0 0
        %1099 = vmatpush1.bf16.msra.mxu0 0
        %1100 = vmatprep.subr.bf16.mxu0 0
        %1101 = vmatpush1.bf16.msra.mxu0 %v1084
        %1102 = vmatprep.subr.bf16.mxu0 0
        %1103 = vmatpush2.bf16.msra.mxu0 0
        %1104 = vmatprep.subr.bf16.mxu0 0
        %1105 = vmatpush2.bf16.msra.mxu0 0
        %1106 = vmatprep.subr.bf16.mxu0 0
        %1107 = vmatpush2.bf16.msra.mxu0 0
        %1108 = vmatprep.subr.bf16.mxu0 0
        %1109 = vmatpush2.bf16.msra.mxu0 0
        %1110 = vmatprep.subr.bf16.mxu0 0
        %1111 = vmatpush2.bf16.msra.mxu0 0
        %1112 = vmatprep.subr.bf16.mxu0 0
        %1113 = vmatpush2.bf16.msra.mxu0 0
        %1114 = vmatprep.subr.bf16.mxu0 0
        %1115 = vmatpush2.bf16.msra.mxu0 0
        %1116 = vmatprep.subr.bf16.mxu0 0
        %1117 = vmatpush2.bf16.msra.mxu0 0
        %1118 = vmatprep.mubr.bf16.mxu0 0
        %1119 = vmatmul.mubr.bf16.gmra.mxu0 %v1081
        %v1120 = vpop.f32.mrf.mxu0
        %v1121 = vadd.f32 0.0, %v1120
        %v1122 = vpop.f32.mrf.mxu0
        %v1123 = vpop.f32.mrf.mxu0
        %v1124 = vpop.f32.mrf.mxu0
        %1125 = vdwg.mxu0
        %v1126 = vmul.f32 %v1073, %v688
        %v1127 = vmul.f32 %v1121, %v689
        %v1128 = vadd.f32 %v1126, %v1127
        %1129 = vst.msk [vmem:[#allocation4 + $0x18] sm:$0xff] %vm751, %v1128
        %v1130 = vld [vmem:[%s5] sm:$0xff]
        %v1131 = vld [vmem:[%s5 + $0x8] sm:$0xff]
        %v1132 = vld [vmem:[#allocation4] sm:$0xff]
        %v1133 = vld [vmem:[#allocation4 + $0x8] sm:$0xff]
        %v1134 = vpack.c.bf16 %v1133, %v1132
        %v1135 = vld [vmem:[%s650] sm:$0xf]
        %v1137 = vsel %vm751, %v1134, 0
        %v1140 = vsel %vm755, %v1135, 0
        %1142 = vmatprep.subr.bf16.mxu0 0
        %1143 = vmatpush1.bf16.msra.mxu0 0
        %1144 = vmatprep.subr.bf16.mxu0 0
        %1145 = vmatpush1.bf16.msra.mxu0 0
        %1146 = vmatprep.subr.bf16.mxu0 0
        %1147 = vmatpush1.bf16.msra.mxu0 0
        %1148 = vmatprep.subr.bf16.mxu0 0
        %1149 = vmatpush1.bf16.msra.mxu0 0
        %1150 = vmatprep.subr.bf16.mxu0 0
        %1151 = vmatpush1.bf16.msra.mxu0 0
        %1152 = vmatprep.subr.bf16.mxu0 0
        %1153 = vmatpush1.bf16.msra.mxu0 0
        %1154 = vmatprep.subr.bf16.mxu0 0
        %1155 = vmatpush1.bf16.msra.mxu0 0
        %1156 = vmatprep.subr.bf16.mxu0 0
        %1157 = vmatpush1.bf16.msra.mxu0 %v1140
        %1158 = vmatprep.subr.bf16.mxu0 0
        %1159 = vmatpush2.bf16.msra.mxu0 0
        %1160 = vmatprep.subr.bf16.mxu0 0
        %1161 = vmatpush2.bf16.msra.mxu0 0
        %1162 = vmatprep.subr.bf16.mxu0 0
        %1163 = vmatpush2.bf16.msra.mxu0 0
        %1164 = vmatprep.subr.bf16.mxu0 0
        %1165 = vmatpush2.bf16.msra.mxu0 0
        %1166 = vmatprep.subr.bf16.mxu0 0
        %1167 = vmatpush2.bf16.msra.mxu0 0
        %1168 = vmatprep.subr.bf16.mxu0 0
        %1169 = vmatpush2.bf16.msra.mxu0 0
        %1170 = vmatprep.subr.bf16.mxu0 0
        %1171 = vmatpush2.bf16.msra.mxu0 0
        %1172 = vmatprep.subr.bf16.mxu0 0
        %1173 = vmatpush2.bf16.msra.mxu0 0
        %1174 = vmatprep.mubr.bf16.mxu0 0
        %1175 = vmatmul.mubr.bf16.gmra.mxu0 %v1137
        %v1176 = vpop.f32.mrf.mxu0
        %v1177 = vadd.f32 %v1130, %v1176
        %v1178 = vpop.f32.mrf.mxu0
        %v1179 = vpop.f32.mrf.mxu0
        %v1180 = vadd.f32 %v1131, %v1179
        %v1181 = vpop.f32.mrf.mxu0
        %1182 = vdwg.mxu0
        %1183 = vmax.xlane.f32.xlu0 %v1177
        %v1184 = vpop.xlane.xlu0 %1183
        %1185 = vmax.xlane.f32.xlu0 %v1180
        %v1186 = vpop.xlane.xlu0 %1185
        %v1187 = vsub.f32 %v1177, %v1184
        %v1188 = vsub.f32 %v1180, %v1186
        %v1189 = vmul.f32 %v1187, 1.442695
        %v1190 = vpow.pop %v1189
        %v1191 = vmul.f32 %v1188, 1.442695
        %v1192 = vpow.pop %v1191
        %1193 = vadd.xlane.f32.xlu0 %v1190
        %v1194 = vpop.xlane.xlu0 %1193
        %1195 = vadd.xlane.f32.xlu0 %v1192
        %v1196 = vpop.xlane.xlu0 %1195
        %v1197 = vmax.f32 %v1194, 1e-30
        %v1198 = vmax.f32 %v1196, 1e-30
        %v1199 = vrcp.pop %v1197
        %v1200 = vrcp.pop %v1198
        %v1201 = vmul.f32 %v1190, %v1199
        %v1202 = vmul.f32 %v1192, %v1200
        %v1203 = vpack.c.bf16 %v1202, %v1201
        %v1204 = vld [vmem:[%s655] sm:$0xf]
        %v1205 = vld [vmem:[%s655 + $0x4] sm:$0xf]
        %v1206 = vld [vmem:[%s655 + $0x8] sm:$0xf]
        %v1207 = vld [vmem:[%s655 + $0xc] sm:$0xf]
        %v1208 = vld [vmem:[%s655 + $0x10] sm:$0xf]
        %v1209 = vld [vmem:[%s655 + $0x14] sm:$0xf]
        %v1210 = vld [vmem:[%s655 + $0x18] sm:$0xf]
        %v1211 = vld [vmem:[%s655 + $0x1c] sm:$0xf]
        %v1212 = vld [vmem:[%s655 + $0x20] sm:$0xf]
        %v1213 = vld [vmem:[%s655 + $0x24] sm:$0xf]
        %v1214 = vld [vmem:[%s655 + $0x28] sm:$0xf]
        %v1215 = vld [vmem:[%s655 + $0x2c] sm:$0xf]
        %v1216 = vld [vmem:[%s655 + $0x30] sm:$0xf]
        %v1217 = vld [vmem:[%s655 + $0x34] sm:$0xf]
        %v1218 = vld [vmem:[%s655 + $0x38] sm:$0xf]
        %v1219 = vld [vmem:[%s655 + $0x3c] sm:$0xf]
        %v1236 = vunpack.c.l.b16 %v1204
        %v1237 = vunpack.c.l.b16 %v1205
        %v1238 = vunpack.c.l.b16 %v1206
        %v1239 = vunpack.c.l.b16 %v1207
        %v1240 = vunpack.c.l.b16 %v1208
        %v1241 = vunpack.c.l.b16 %v1209
        %v1242 = vunpack.c.l.b16 %v1210
        %v1243 = vunpack.c.l.b16 %v1211
        %v1244 = vunpack.c.l.b16 %v1212
        %v1245 = vunpack.c.l.b16 %v1213
        %v1246 = vunpack.c.l.b16 %v1214
        %v1247 = vunpack.c.l.b16 %v1215
        %v1248 = vunpack.c.l.b16 %v1216
        %v1249 = vunpack.c.l.b16 %v1217
        %v1250 = vunpack.c.l.b16 %v1218
        %v1251 = vunpack.c.l.b16 %v1219
        %v1252 = vpack.c.b16 %v1237, %v1236
        %v1253 = vpack.c.b16 %v1239, %v1238
        %v1254 = vpack.c.b16 %v1241, %v1240
        %v1255 = vpack.c.b16 %v1243, %v1242
        %v1256 = vpack.c.b16 %v1245, %v1244
        %v1257 = vpack.c.b16 %v1247, %v1246
        %v1258 = vpack.c.b16 %v1249, %v1248
        %v1259 = vpack.c.b16 %v1251, %v1250
        %1268 = vmatprep.subr.bf16.mxu0 0
        %1269 = vmatpush1.bf16.msra.mxu0 %v1259
        %1270 = vmatprep.subr.bf16.mxu0 0
        %1271 = vmatpush1.bf16.msra.mxu0 %v1258
        %1272 = vmatprep.subr.bf16.mxu0 0
        %1273 = vmatpush1.bf16.msra.mxu0 %v1257
        %1274 = vmatprep.subr.bf16.mxu0 0
        %1275 = vmatpush1.bf16.msra.mxu0 %v1256
        %1276 = vmatprep.subr.bf16.mxu0 0
        %1277 = vmatpush1.bf16.msra.mxu0 %v1255
        %1278 = vmatprep.subr.bf16.mxu0 0
        %1279 = vmatpush1.bf16.msra.mxu0 %v1254
        %1280 = vmatprep.subr.bf16.mxu0 0
        %1281 = vmatpush1.bf16.msra.mxu0 %v1253
        %1282 = vmatprep.subr.bf16.mxu0 0
        %1283 = vmatpush1.bf16.msra.mxu0 %v1252
        %1284 = vmatprep.subr.bf16.mxu0 0
        %1285 = vmatpush2.bf16.msra.mxu0 0
        %1286 = vmatprep.subr.bf16.mxu0 0
        %1287 = vmatpush2.bf16.msra.mxu0 0
        %1288 = vmatprep.subr.bf16.mxu0 0
        %1289 = vmatpush2.bf16.msra.mxu0 0
        %1290 = vmatprep.subr.bf16.mxu0 0
        %1291 = vmatpush2.bf16.msra.mxu0 0
        %1292 = vmatprep.subr.bf16.mxu0 0
        %1293 = vmatpush2.bf16.msra.mxu0 0
        %1294 = vmatprep.subr.bf16.mxu0 0
        %1295 = vmatpush2.bf16.msra.mxu0 0
        %1296 = vmatprep.subr.bf16.mxu0 0
        %1297 = vmatpush2.bf16.msra.mxu0 0
        %1298 = vmatprep.subr.bf16.mxu0 0
        %1299 = vmatpush2.bf16.msra.mxu0 0
        %1300 = vmatprep.mubr.bf16.mxu0 0
        %1301 = vmatmul.mubr.bf16.gmra.mxu0 %v1203
        %v1302 = vpop.f32.mrf.mxu0
        %v1303 = vadd.f32 0.0, %v1302
        %v1304 = vpop.f32.mrf.mxu0
        %v1305 = vpop.f32.mrf.mxu0
        %v1306 = vadd.f32 0.0, %v1305
        %v1307 = vpop.f32.mrf.mxu0
        %1308 = vdwg.mxu0
        %v1309 = vpack.c.bf16 %v1303, %v1303
        %v1310 = vld [vmem:[%s630] sm:$0xf]
        %v1311 = vpack.c.bf16 %v1306, %v1306
        %s1312 = scalar_lea.vmem %s630, 4
        %v1313 = vld [vmem:[%s1312] sm:$0xf]
        %v1315 = vsel %vm751, %v1311, 0
        %v1318 = vsel %vm755, %v1313, 0
        %1320 = vmatprep.subr.bf16.mxu0 0
        %1321 = vmatpush1.bf16.msra.mxu0 0
        %1322 = vmatprep.subr.bf16.mxu0 0
        %1323 = vmatpush1.bf16.msra.mxu0 0
        %1324 = vmatprep.subr.bf16.mxu0 0
        %1325 = vmatpush1.bf16.msra.mxu0 0
        %1326 = vmatprep.subr.bf16.mxu0 0
        %1327 = vmatpush1.bf16.msra.mxu0 0
        %1328 = vmatprep.subr.bf16.mxu0 0
        %1329 = vmatpush1.bf16.msra.mxu0 0
        %1330 = vmatprep.subr.bf16.mxu0 0
        %1331 = vmatpush1.bf16.msra.mxu0 0
        %1332 = vmatprep.subr.bf16.mxu0 0
        %1333 = vmatpush1.bf16.msra.mxu0 0
        %1334 = vmatprep.subr.bf16.mxu0 0
        %1335 = vmatpush1.bf16.msra.mxu0 %v1318
        %1336 = vmatprep.subr.bf16.mxu0 0
        %1337 = vmatpush2.bf16.msra.mxu0 0
        %1338 = vmatprep.subr.bf16.mxu0 0
        %1339 = vmatpush2.bf16.msra.mxu0 0
        %1340 = vmatprep.subr.bf16.mxu0 0
        %1341 = vmatpush2.bf16.msra.mxu0 0
        %1342 = vmatprep.subr.bf16.mxu0 0
        %1343 = vmatpush2.bf16.msra.mxu0 0
        %1344 = vmatprep.subr.bf16.mxu0 0
        %1345 = vmatpush2.bf16.msra.mxu0 0
        %1346 = vmatprep.subr.bf16.mxu0 0
        %1347 = vmatpush2.bf16.msra.mxu0 0
        %1348 = vmatprep.subr.bf16.mxu0 0
        %1349 = vmatpush2.bf16.msra.mxu0 0
        %1350 = vmatprep.subr.bf16.mxu0 0
        %1351 = vmatpush2.bf16.msra.mxu0 0
        %1352 = vmatprep.mubr.bf16.mxu0 0
        %1353 = vmatmul.mubr.bf16.gmra.mxu0 %v1315
        %v1354 = vpop.f32.mrf.mxu0
        %v1355 = vadd.f32 0.0, %v1354
        %v1356 = vpop.f32.mrf.mxu0
        %v1357 = vpop.f32.mrf.mxu0
        %v1358 = vpop.f32.mrf.mxu0
        %1359 = vdwg.mxu0
        %v1361 = vsel %vm751, %v1309, 0
        %v1364 = vsel %vm755, %v1310, 0
        %1366 = vmatprep.subr.bf16.mxu0 0
        %1367 = vmatpush1.bf16.msra.mxu0 0
        %1368 = vmatprep.subr.bf16.mxu0 0
        %1369 = vmatpush1.bf16.msra.mxu0 0
        %1370 = vmatprep.subr.bf16.mxu0 0
        %1371 = vmatpush1.bf16.msra.mxu0 0
        %1372 = vmatprep.subr.bf16.mxu0 0
        %1373 = vmatpush1.bf16.msra.mxu0 0
        %1374 = vmatprep.subr.bf16.mxu0 0
        %1375 = vmatpush1.bf16.msra.mxu0 0
        %1376 = vmatprep.subr.bf16.mxu0 0
        %1377 = vmatpush1.bf16.msra.mxu0 0
        %1378 = vmatprep.subr.bf16.mxu0 0
        %1379 = vmatpush1.bf16.msra.mxu0 0
        %1380 = vmatprep.subr.bf16.mxu0 0
        %1381 = vmatpush1.bf16.msra.mxu0 %v1364
        %1382 = vmatprep.subr.bf16.mxu0 0
        %1383 = vmatpush2.bf16.msra.mxu0 0
        %1384 = vmatprep.subr.bf16.mxu0 0
        %1385 = vmatpush2.bf16.msra.mxu0 0
        %1386 = vmatprep.subr.bf16.mxu0 0
        %1387 = vmatpush2.bf16.msra.mxu0 0
        %1388 = vmatprep.subr.bf16.mxu0 0
        %1389 = vmatpush2.bf16.msra.mxu0 0
        %1390 = vmatprep.subr.bf16.mxu0 0
        %1391 = vmatpush2.bf16.msra.mxu0 0
        %1392 = vmatprep.subr.bf16.mxu0 0
        %1393 = vmatpush2.bf16.msra.mxu0 0
        %1394 = vmatprep.subr.bf16.mxu0 0
        %1395 = vmatpush2.bf16.msra.mxu0 0
        %1396 = vmatprep.subr.bf16.mxu0 0
        %1397 = vmatpush2.bf16.msra.mxu0 0
        %1398 = vmatprep.mubr.bf16.mxu0 0
        %1399 = vmatmul.mubr.bf16.gmra.mxu0 %v1361
        %v1400 = vpop.f32.mrf.mxu0
        %v1401 = vadd.f32 %v1355, %v1400
        %v1402 = vpop.f32.mrf.mxu0
        %v1403 = vpop.f32.mrf.mxu0
        %v1404 = vpop.f32.mrf.mxu0
        %1405 = vdwg.mxu0
        %v1406 = vld [vmem:[#allocation4 + $0x10] sm:$0xff]
        %v1407 = vld [vmem:[#allocation4 + $0x18] sm:$0xff]
        %v1408 = vpack.c.bf16 %v1407, %v1406
        %s1409 = scalar_lea.vmem %s650, 4
        %v1410 = vld [vmem:[%s1409] sm:$0xf]
        %v1412 = vsel %vm751, %v1408, 0
        %v1415 = vsel %vm755, %v1410, 0
        %1417 = vmatprep.subr.bf16.mxu0 0
        %1418 = vmatpush1.bf16.msra.mxu0 0
        %1419 = vmatprep.subr.bf16.mxu0 0
        %1420 = vmatpush1.bf16.msra.mxu0 0
        %1421 = vmatprep.subr.bf16.mxu0 0
        %1422 = vmatpush1.bf16.msra.mxu0 0
        %1423 = vmatprep.subr.bf16.mxu0 0
        %1424 = vmatpush1.bf16.msra.mxu0 0
        %1425 = vmatprep.subr.bf16.mxu0 0
        %1426 = vmatpush1.bf16.msra.mxu0 0
        %1427 = vmatprep.subr.bf16.mxu0 0
        %1428 = vmatpush1.bf16.msra.mxu0 0
        %1429 = vmatprep.subr.bf16.mxu0 0
        %1430 = vmatpush1.bf16.msra.mxu0 0
        %1431 = vmatprep.subr.bf16.mxu0 0
        %1432 = vmatpush1.bf16.msra.mxu0 %v1415
        %1433 = vmatprep.subr.bf16.mxu0 0
        %1434 = vmatpush2.bf16.msra.mxu0 0
        %1435 = vmatprep.subr.bf16.mxu0 0
        %1436 = vmatpush2.bf16.msra.mxu0 0
        %1437 = vmatprep.subr.bf16.mxu0 0
        %1438 = vmatpush2.bf16.msra.mxu0 0
        %1439 = vmatprep.subr.bf16.mxu0 0
        %1440 = vmatpush2.bf16.msra.mxu0 0
        %1441 = vmatprep.subr.bf16.mxu0 0
        %1442 = vmatpush2.bf16.msra.mxu0 0
        %1443 = vmatprep.subr.bf16.mxu0 0
        %1444 = vmatpush2.bf16.msra.mxu0 0
        %1445 = vmatprep.subr.bf16.mxu0 0
        %1446 = vmatpush2.bf16.msra.mxu0 0
        %1447 = vmatprep.subr.bf16.mxu0 0
        %1448 = vmatpush2.bf16.msra.mxu0 0
        %1449 = vmatprep.mubr.bf16.mxu0 0
        %1450 = vmatmul.mubr.bf16.gmra.mxu0 %v1412
        %v1451 = vpop.f32.mrf.mxu0
        %v1452 = vadd.f32 %v1130, %v1451
        %v1453 = vpop.f32.mrf.mxu0
        %v1454 = vpop.f32.mrf.mxu0
        %v1455 = vadd.f32 %v1131, %v1454
        %v1456 = vpop.f32.mrf.mxu0
        %1457 = vdwg.mxu0
        %1458 = vmax.xlane.f32.xlu0 %v1452
        %v1459 = vpop.xlane.xlu0 %1458
        %1460 = vmax.xlane.f32.xlu0 %v1455
        %v1461 = vpop.xlane.xlu0 %1460
        %v1462 = vsub.f32 %v1452, %v1459
        %v1463 = vsub.f32 %v1455, %v1461
        %v1464 = vmul.f32 %v1462, 1.442695
        %v1465 = vpow.pop %v1464
        %v1466 = vmul.f32 %v1463, 1.442695
        %v1467 = vpow.pop %v1466
        %1468 = vadd.xlane.f32.xlu0 %v1465
        %v1469 = vpop.xlane.xlu0 %1468
        %1470 = vadd.xlane.f32.xlu0 %v1467
        %v1471 = vpop.xlane.xlu0 %1470
        %v1472 = vmax.f32 %v1469, 1e-30
        %v1473 = vmax.f32 %v1471, 1e-30
        %v1474 = vrcp.pop %v1472
        %v1475 = vrcp.pop %v1473
        %v1476 = vmul.f32 %v1465, %v1474
        %v1477 = vmul.f32 %v1467, %v1475
        %v1478 = vpack.c.bf16 %v1477, %v1476
        %s1479 = scalar_lea.vmem %s655, 64
        %v1480 = vld [vmem:[%s1479] sm:$0xf]
        %v1481 = vld [vmem:[%s1479 + $0x4] sm:$0xf]
        %v1482 = vld [vmem:[%s1479 + $0x8] sm:$0xf]
        %v1483 = vld [vmem:[%s1479 + $0xc] sm:$0xf]
        %v1484 = vld [vmem:[%s1479 + $0x10] sm:$0xf]
        %v1485 = vld [vmem:[%s1479 + $0x14] sm:$0xf]
        %v1486 = vld [vmem:[%s1479 + $0x18] sm:$0xf]
        %v1487 = vld [vmem:[%s1479 + $0x1c] sm:$0xf]
        %v1488 = vld [vmem:[%s1479 + $0x20] sm:$0xf]
        %v1489 = vld [vmem:[%s1479 + $0x24] sm:$0xf]
        %v1490 = vld [vmem:[%s1479 + $0x28] sm:$0xf]
        %v1491 = vld [vmem:[%s1479 + $0x2c] sm:$0xf]
        %v1492 = vld [vmem:[%s1479 + $0x30] sm:$0xf]
        %v1493 = vld [vmem:[%s1479 + $0x34] sm:$0xf]
        %v1494 = vld [vmem:[%s1479 + $0x38] sm:$0xf]
        %v1495 = vld [vmem:[%s1479 + $0x3c] sm:$0xf]
        %v1512 = vunpack.c.l.b16 %v1480
        %v1513 = vunpack.c.l.b16 %v1481
        %v1514 = vunpack.c.l.b16 %v1482
        %v1515 = vunpack.c.l.b16 %v1483
        %v1516 = vunpack.c.l.b16 %v1484
        %v1517 = vunpack.c.l.b16 %v1485
        %v1518 = vunpack.c.l.b16 %v1486
        %v1519 = vunpack.c.l.b16 %v1487
        %v1520 = vunpack.c.l.b16 %v1488
        %v1521 = vunpack.c.l.b16 %v1489
        %v1522 = vunpack.c.l.b16 %v1490
        %v1523 = vunpack.c.l.b16 %v1491
        %v1524 = vunpack.c.l.b16 %v1492
        %v1525 = vunpack.c.l.b16 %v1493
        %v1526 = vunpack.c.l.b16 %v1494
        %v1527 = vunpack.c.l.b16 %v1495
        %v1528 = vpack.c.b16 %v1513, %v1512
        %v1529 = vpack.c.b16 %v1515, %v1514
        %v1530 = vpack.c.b16 %v1517, %v1516
        %v1531 = vpack.c.b16 %v1519, %v1518
        %v1532 = vpack.c.b16 %v1521, %v1520
        %v1533 = vpack.c.b16 %v1523, %v1522
        %v1534 = vpack.c.b16 %v1525, %v1524
        %v1535 = vpack.c.b16 %v1527, %v1526
        %1544 = vmatprep.subr.bf16.mxu0 0
        %1545 = vmatpush1.bf16.msra.mxu0 %v1535
        %1546 = vmatprep.subr.bf16.mxu0 0
        %1547 = vmatpush1.bf16.msra.mxu0 %v1534
        %1548 = vmatprep.subr.bf16.mxu0 0
        %1549 = vmatpush1.bf16.msra.mxu0 %v1533
        %1550 = vmatprep.subr.bf16.mxu0 0
        %1551 = vmatpush1.bf16.msra.mxu0 %v1532
        %1552 = vmatprep.subr.bf16.mxu0 0
        %1553 = vmatpush1.bf16.msra.mxu0 %v1531
        %1554 = vmatprep.subr.bf16.mxu0 0
        %1555 = vmatpush1.bf16.msra.mxu0 %v1530
        %1556 = vmatprep.subr.bf16.mxu0 0
        %1557 = vmatpush1.bf16.msra.mxu0 %v1529
        %1558 = vmatprep.subr.bf16.mxu0 0
        %1559 = vmatpush1.bf16.msra.mxu0 %v1528
        %1560 = vmatprep.subr.bf16.mxu0 0
        %1561 = vmatpush2.bf16.msra.mxu0 0
        %1562 = vmatprep.subr.bf16.mxu0 0
        %1563 = vmatpush2.bf16.msra.mxu0 0
        %1564 = vmatprep.subr.bf16.mxu0 0
        %1565 = vmatpush2.bf16.msra.mxu0 0
        %1566 = vmatprep.subr.bf16.mxu0 0
        %1567 = vmatpush2.bf16.msra.mxu0 0
        %1568 = vmatprep.subr.bf16.mxu0 0
        %1569 = vmatpush2.bf16.msra.mxu0 0
        %1570 = vmatprep.subr.bf16.mxu0 0
        %1571 = vmatpush2.bf16.msra.mxu0 0
        %1572 = vmatprep.subr.bf16.mxu0 0
        %1573 = vmatpush2.bf16.msra.mxu0 0
        %1574 = vmatprep.subr.bf16.mxu0 0
        %1575 = vmatpush2.bf16.msra.mxu0 0
        %1576 = vmatprep.mubr.bf16.mxu0 0
        %1577 = vmatmul.mubr.bf16.gmra.mxu0 %v1478
        %v1578 = vpop.f32.mrf.mxu0
        %v1579 = vadd.f32 0.0, %v1578
        %v1580 = vpop.f32.mrf.mxu0
        %v1581 = vpop.f32.mrf.mxu0
        %v1582 = vadd.f32 0.0, %v1581
        %v1583 = vpop.f32.mrf.mxu0
        %1584 = vdwg.mxu0
        %v1585 = vpack.c.bf16 %v1579, %v1579
        %s1586 = scalar_lea.vmem %s630, 8
        %v1587 = vld [vmem:[%s1586] sm:$0xf]
        %v1589 = vsel %vm751, %v1585, 0
        %v1592 = vsel %vm755, %v1587, 0
        %1594 = vmatprep.subr.bf16.mxu0 0
        %1595 = vmatpush1.bf16.msra.mxu0 0
        %1596 = vmatprep.subr.bf16.mxu0 0
        %1597 = vmatpush1.bf16.msra.mxu0 0
        %1598 = vmatprep.subr.bf16.mxu0 0
        %1599 = vmatpush1.bf16.msra.mxu0 0
        %1600 = vmatprep.subr.bf16.mxu0 0
        %1601 = vmatpush1.bf16.msra.mxu0 0
        %1602 = vmatprep.subr.bf16.mxu0 0
        %1603 = vmatpush1.bf16.msra.mxu0 0
        %1604 = vmatprep.subr.bf16.mxu0 0
        %1605 = vmatpush1.bf16.msra.mxu0 0
        %1606 = vmatprep.subr.bf16.mxu0 0
        %1607 = vmatpush1.bf16.msra.mxu0 0
        %1608 = vmatprep.subr.bf16.mxu0 0
        %1609 = vmatpush1.bf16.msra.mxu0 %v1592
        %1610 = vmatprep.subr.bf16.mxu0 0
        %1611 = vmatpush2.bf16.msra.mxu0 0
        %1612 = vmatprep.subr.bf16.mxu0 0
        %1613 = vmatpush2.bf16.msra.mxu0 0
        %1614 = vmatprep.subr.bf16.mxu0 0
        %1615 = vmatpush2.bf16.msra.mxu0 0
        %1616 = vmatprep.subr.bf16.mxu0 0
        %1617 = vmatpush2.bf16.msra.mxu0 0
        %1618 = vmatprep.subr.bf16.mxu0 0
        %1619 = vmatpush2.bf16.msra.mxu0 0
        %1620 = vmatprep.subr.bf16.mxu0 0
        %1621 = vmatpush2.bf16.msra.mxu0 0
        %1622 = vmatprep.subr.bf16.mxu0 0
        %1623 = vmatpush2.bf16.msra.mxu0 0
        %1624 = vmatprep.subr.bf16.mxu0 0
        %1625 = vmatpush2.bf16.msra.mxu0 0
        %1626 = vmatprep.mubr.bf16.mxu0 0
        %1627 = vmatmul.mubr.bf16.gmra.mxu0 %v1589
        %v1628 = vpop.f32.mrf.mxu0
        %v1629 = vadd.f32 0.0, %v1628
        %v1630 = vpop.f32.mrf.mxu0
        %v1631 = vpop.f32.mrf.mxu0
        %v1632 = vpop.f32.mrf.mxu0
        %1633 = vdwg.mxu0
        %v1634 = vadd.f32 %v1401, %v1629
        %v1635 = vpack.c.bf16 %v1582, %v1582
        %s1636 = scalar_lea.vmem %s630, 12
        %v1637 = vld [vmem:[%s1636] sm:$0xf]
        %v1639 = vsel %vm751, %v1635, 0
        %v1642 = vsel %vm755, %v1637, 0
        %1644 = vmatprep.subr.bf16.mxu0 0
        %1645 = vmatpush1.bf16.msra.mxu0 0
        %1646 = vmatprep.subr.bf16.mxu0 0
        %1647 = vmatpush1.bf16.msra.mxu0 0
        %1648 = vmatprep.subr.bf16.mxu0 0
        %1649 = vmatpush1.bf16.msra.mxu0 0
        %1650 = vmatprep.subr.bf16.mxu0 0
        %1651 = vmatpush1.bf16.msra.mxu0 0
        %1652 = vmatprep.subr.bf16.mxu0 0
        %1653 = vmatpush1.bf16.msra.mxu0 0
        %1654 = vmatprep.subr.bf16.mxu0 0
        %1655 = vmatpush1.bf16.msra.mxu0 0
        %1656 = vmatprep.subr.bf16.mxu0 0
        %1657 = vmatpush1.bf16.msra.mxu0 0
        %1658 = vmatprep.subr.bf16.mxu0 0
        %1659 = vmatpush1.bf16.msra.mxu0 %v1642
        %1660 = vmatprep.subr.bf16.mxu0 0
        %1661 = vmatpush2.bf16.msra.mxu0 0
        %1662 = vmatprep.subr.bf16.mxu0 0
        %1663 = vmatpush2.bf16.msra.mxu0 0
        %1664 = vmatprep.subr.bf16.mxu0 0
        %1665 = vmatpush2.bf16.msra.mxu0 0
        %1666 = vmatprep.subr.bf16.mxu0 0
        %1667 = vmatpush2.bf16.msra.mxu0 0
        %1668 = vmatprep.subr.bf16.mxu0 0
        %1669 = vmatpush2.bf16.msra.mxu0 0
        %1670 = vmatprep.subr.bf16.mxu0 0
        %1671 = vmatpush2.bf16.msra.mxu0 0
        %1672 = vmatprep.subr.bf16.mxu0 0
        %1673 = vmatpush2.bf16.msra.mxu0 0
        %1674 = vmatprep.subr.bf16.mxu0 0
        %1675 = vmatpush2.bf16.msra.mxu0 0
        %1676 = vmatprep.mubr.bf16.mxu0 0
        %1677 = vmatmul.mubr.bf16.gmra.mxu0 %v1639
        %v1678 = vpop.f32.mrf.mxu0
        %v1679 = vadd.f32 0.0, %v1678
        %v1680 = vpop.f32.mrf.mxu0
        %v1681 = vpop.f32.mrf.mxu0
        %v1682 = vpop.f32.mrf.mxu0
        %1683 = vdwg.mxu0
        %v1684 = vadd.f32 %v1634, %v1679
        %v1685 = vadd.f32 %v1684, %v668
        %v1686 = vld [vmem:[%s620] sm:$0x1]
        %v1687 = vmul.f32 %v1685, %v1685
        %v1688 = vsel %vm671, %v1687, 0.0
        %1689 = vadd.xlane.f32.xlu0 %v1688
        %v1690 = vpop.xlane.xlu0 %1689
        %v1691 = vmul.f32 %v1690, %v675
        %v1692 = vadd.f32 %v1691, 1e-06
        %v1693 = vrsqrt.pop %v1692
        %v1694 = vmul.f32 %v1685, %v1693
        %v1696 = vlaneseq
        %v1697 = vshrl.u32 %v1696, 7
        %v1698 = vsub.s32 0, %v1697
        %v1699 = vrot.slane %v1686, %v1698
        %v1701 = vmul.f32 %v1694, %v1699
        %v1702 = vpack.c.bf16 %v1701, %v1701
        %v1703 = vld [vmem:[%s635] sm:$0xf]
        %v1704 = vld [vmem:[%s635 + $0x4] sm:$0xf]
        %v1705 = vld [vmem:[%s635 + $0x8] sm:$0xf]
        %v1706 = vld [vmem:[%s635 + $0xc] sm:$0xf]
        %v1711 = vunpack.c.l.b16 %v1703
        %v1712 = vunpack.c.l.b16 %v1704
        %v1713 = vunpack.c.l.b16 %v1705
        %v1714 = vunpack.c.l.b16 %v1706
        %v1715 = vpack.c.b16 %v1712, %v1711
        %v1716 = vpack.c.b16 %v1714, %v1713
        %v1720 = vsel %vm671, %v1702, 0
        %1722 = vmatprep.subr.bf16.mxu0 0
        %1723 = vmatpush1.bf16.msra.mxu0 0
        %1724 = vmatprep.subr.bf16.mxu0 0
        %1725 = vmatpush1.bf16.msra.mxu0 0
        %1726 = vmatprep.subr.bf16.mxu0 0
        %1727 = vmatpush1.bf16.msra.mxu0 0
        %1728 = vmatprep.subr.bf16.mxu0 0
        %1729 = vmatpush1.bf16.msra.mxu0 0
        %1730 = vmatprep.subr.bf16.mxu0 0
        %1731 = vmatpush1.bf16.msra.mxu0 0
        %1732 = vmatprep.subr.bf16.mxu0 0
        %1733 = vmatpush1.bf16.msra.mxu0 0
        %1734 = vmatprep.subr.bf16.mxu0 0
        %1735 = vmatpush1.bf16.msra.mxu0 %v1716
        %1736 = vmatprep.subr.bf16.mxu0 0
        %1737 = vmatpush1.bf16.msra.mxu0 %v1715
        %1738 = vmatprep.subr.bf16.mxu0 0
        %1739 = vmatpush2.bf16.msra.mxu0 0
        %1740 = vmatprep.subr.bf16.mxu0 0
        %1741 = vmatpush2.bf16.msra.mxu0 0
        %1742 = vmatprep.subr.bf16.mxu0 0
        %1743 = vmatpush2.bf16.msra.mxu0 0
        %1744 = vmatprep.subr.bf16.mxu0 0
        %1745 = vmatpush2.bf16.msra.mxu0 0
        %1746 = vmatprep.subr.bf16.mxu0 0
        %1747 = vmatpush2.bf16.msra.mxu0 0
        %1748 = vmatprep.subr.bf16.mxu0 0
        %1749 = vmatpush2.bf16.msra.mxu0 0
        %1750 = vmatprep.subr.bf16.mxu0 0
        %1751 = vmatpush2.bf16.msra.mxu0 0
        %1752 = vmatprep.subr.bf16.mxu0 0
        %1753 = vmatpush2.bf16.msra.mxu0 0
        %1754 = vmatprep.mubr.bf16.mxu0 0
        %1755 = vmatmul.mubr.bf16.gmra.mxu0 %v1720
        %v1756 = vpop.f32.mrf.mxu0
        %v1757 = vadd.f32 0.0, %v1756
        %v1758 = vpop.f32.mrf.mxu0
        %v1759 = vpop.f32.mrf.mxu0
        %v1760 = vpop.f32.mrf.mxu0
        %1761 = vdwg.mxu0
        %v1762 = vld [vmem:[%s640] sm:$0xf]
        %v1763 = vld [vmem:[%s640 + $0x4] sm:$0xf]
        %v1764 = vld [vmem:[%s640 + $0x8] sm:$0xf]
        %v1765 = vld [vmem:[%s640 + $0xc] sm:$0xf]
        %v1770 = vunpack.c.l.b16 %v1762
        %v1771 = vunpack.c.l.b16 %v1763
        %v1772 = vunpack.c.l.b16 %v1764
        %v1773 = vunpack.c.l.b16 %v1765
        %v1774 = vpack.c.b16 %v1771, %v1770
        %v1775 = vpack.c.b16 %v1773, %v1772
        %1778 = vmatprep.subr.bf16.mxu0 0
        %1779 = vmatpush1.bf16.msra.mxu0 0
        %1780 = vmatprep.subr.bf16.mxu0 0
        %1781 = vmatpush1.bf16.msra.mxu0 0
        %1782 = vmatprep.subr.bf16.mxu0 0
        %1783 = vmatpush1.bf16.msra.mxu0 0
        %1784 = vmatprep.subr.bf16.mxu0 0
        %1785 = vmatpush1.bf16.msra.mxu0 0
        %1786 = vmatprep.subr.bf16.mxu0 0
        %1787 = vmatpush1.bf16.msra.mxu0 0
        %1788 = vmatprep.subr.bf16.mxu0 0
        %1789 = vmatpush1.bf16.msra.mxu0 0
        %1790 = vmatprep.subr.bf16.mxu0 0
        %1791 = vmatpush1.bf16.msra.mxu0 %v1775
        %1792 = vmatprep.subr.bf16.mxu0 0
        %1793 = vmatpush1.bf16.msra.mxu0 %v1774
        %1794 = vmatprep.subr.bf16.mxu0 0
        %1795 = vmatpush2.bf16.msra.mxu0 0
        %1796 = vmatprep.subr.bf16.mxu0 0
        %1797 = vmatpush2.bf16.msra.mxu0 0
        %1798 = vmatprep.subr.bf16.mxu0 0
        %1799 = vmatpush2.bf16.msra.mxu0 0
        %1800 = vmatprep.subr.bf16.mxu0 0
        %1801 = vmatpush2.bf16.msra.mxu0 0
        %1802 = vmatprep.subr.bf16.mxu0 0
        %1803 = vmatpush2.bf16.msra.mxu0 0
        %1804 = vmatprep.subr.bf16.mxu0 0
        %1805 = vmatpush2.bf16.msra.mxu0 0
        %1806 = vmatprep.subr.bf16.mxu0 0
        %1807 = vmatpush2.bf16.msra.mxu0 0
        %1808 = vmatprep.subr.bf16.mxu0 0
        %1809 = vmatpush2.bf16.msra.mxu0 0
        %1810 = vmatprep.mubr.bf16.mxu0 0
        %1811 = vmatmul.mubr.bf16.gmra.mxu0 %v1720
        %v1812 = vpop.f32.mrf.mxu0
        %v1813 = vadd.f32 0.0, %v1812
        %v1814 = vpop.f32.mrf.mxu0
        %v1815 = vpop.f32.mrf.mxu0
        %v1816 = vpop.f32.mrf.mxu0
        %1817 = vdwg.mxu0
        %v1818 = vxor.u32 %v1757, 2147483648
        %v1819 = vmul.f32 %v1818, 1.442695
        %v1820 = vpow.pop %v1819
        %v1821 = vadd.f32 %v1820, 1.0
        %v1822 = vrcp.pop %v1821
        %v1823 = vmul.f32 1.0, %v1822
        %v1824 = vmul.f32 %v1757, %v1823
        %v1825 = vmul.f32 %v1824, %v1813
        %v1826 = vpack.c.bf16 %v1825, %v1825
        %v1827 = vld [vmem:[%s645] sm:$0xf]
        %v1828 = vld [vmem:[%s645 + $0x4] sm:$0xf]
        %v1829 = vld [vmem:[%s645 + $0x8] sm:$0xf]
        %v1830 = vld [vmem:[%s645 + $0xc] sm:$0xf]
        %v1831 = vld [vmem:[%s645 + $0x10] sm:$0xf]
        %v1832 = vld [vmem:[%s645 + $0x14] sm:$0xf]
        %v1833 = vld [vmem:[%s645 + $0x18] sm:$0xf]
        %v1834 = vld [vmem:[%s645 + $0x1c] sm:$0xf]
        %v1843 = vunpack.c.l.b16 %v1827
        %v1844 = vunpack.c.l.b16 %v1828
        %v1845 = vunpack.c.l.b16 %v1829
        %v1846 = vunpack.c.l.b16 %v1830
        %v1847 = vunpack.c.l.b16 %v1831
        %v1848 = vunpack.c.l.b16 %v1832
        %v1849 = vunpack.c.l.b16 %v1833
        %v1850 = vunpack.c.l.b16 %v1834
        %v1851 = vpack.c.b16 %v1844, %v1843
        %v1852 = vpack.c.b16 %v1846, %v1845
        %v1853 = vpack.c.b16 %v1848, %v1847
        %v1854 = vpack.c.b16 %v1850, %v1849
        %vm1859 = vcmask 523264
        %v1861 = vsel %vm1859, %v1826, 0
        %1863 = vmatprep.subr.bf16.mxu0 0
        %1864 = vmatpush1.bf16.msra.mxu0 0
        %1865 = vmatprep.subr.bf16.mxu0 0
        %1866 = vmatpush1.bf16.msra.mxu0 0
        %1867 = vmatprep.subr.bf16.mxu0 0
        %1868 = vmatpush1.bf16.msra.mxu0 0
        %1869 = vmatprep.subr.bf16.mxu0 0
        %1870 = vmatpush1.bf16.msra.mxu0 0
        %1871 = vmatprep.subr.bf16.mxu0 0
        %1872 = vmatpush1.bf16.msra.mxu0 %v1854
        %1873 = vmatprep.subr.bf16.mxu0 0
        %1874 = vmatpush1.bf16.msra.mxu0 %v1853
        %1875 = vmatprep.subr.bf16.mxu0 0
        %1876 = vmatpush1.bf16.msra.mxu0 %v1852
        %1877 = vmatprep.subr.bf16.mxu0 0
        %1878 = vmatpush1.bf16.msra.mxu0 %v1851
        %1879 = vmatprep.subr.bf16.mxu0 0
        %1880 = vmatpush2.bf16.msra.mxu0 0
        %1881 = vmatprep.subr.bf16.mxu0 0
        %1882 = vmatpush2.bf16.msra.mxu0 0
        %1883 = vmatprep.subr.bf16.mxu0 0
        %1884 = vmatpush2.bf16.msra.mxu0 0
        %1885 = vmatprep.subr.bf16.mxu0 0
        %1886 = vmatpush2.bf16.msra.mxu0 0
        %1887 = vmatprep.subr.bf16.mxu0 0
        %1888 = vmatpush2.bf16.msra.mxu0 0
        %1889 = vmatprep.subr.bf16.mxu0 0
        %1890 = vmatpush2.bf16.msra.mxu0 0
        %1891 = vmatprep.subr.bf16.mxu0 0
        %1892 = vmatpush2.bf16.msra.mxu0 0
        %1893 = vmatprep.subr.bf16.mxu0 0
        %1894 = vmatpush2.bf16.msra.mxu0 0
        %1895 = vmatprep.mubr.bf16.mxu0 0
        %1896 = vmatmul.mubr.bf16.gmra.mxu0 %v1861
        %v1897 = vpop.f32.mrf.mxu0
        %v1898 = vadd.f32 0.0, %v1897
        %v1899 = vpop.f32.mrf.mxu0
        %v1900 = vpop.f32.mrf.mxu0
        %v1901 = vpop.f32.mrf.mxu0
        %1902 = vdwg.mxu0
        %1903 = vst.msk [vmem:[#allocation2] sm:$0xff] %vm671, %v1898
        %1904 = vst.msk [vmem:[#allocation3] sm:$0xff] %vm671, %v1685
        %p1905 = scmp.eq.s32.totalorder %s28, 1
        // Predicated region
        $region89: #{tpu_custom_call.1} parent=83 // pred_check
          %p1906 = pneg %p1905
        $region90: #{tpu_custom_call.1} parent=83 // pred_check_branch
          %1908 = sbr.rel (%p1906) target = $region92
        $region91: #{tpu_custom_call.1} parent=83 // pred_region
          %v1909 = vadd.f32 %v1898, %v1685
          %v1910 = vld [vmem:[%s15] sm:$0x1]
          %v1911 = vmul.f32 %v1909, %v1909
          %v1912 = vsel %vm671, %v1911, 0.0
          %1913 = vadd.xlane.f32.xlu0 %v1912
          %v1914 = vpop.xlane.xlu0 %1913
          %v1915 = vmul.f32 %v1914, %v675
          %v1916 = vadd.f32 %v1915, 1e-06
          %v1917 = vrsqrt.pop %v1916
          %v1918 = vmul.f32 %v1909, %v1917
          %v1920 = vlaneseq
          %v1921 = vshrl.u32 %v1920, 7
          %v1922 = vsub.s32 0, %v1921
          %v1923 = vrot.slane %v1910, %v1922
          %v1925 = vmul.f32 %v1918, %v1923
          %1926 = vst.msk [vmem:[#allocation5] sm:$0xff] %vm671, %v1925
        $region92: #{tpu_custom_call.1} parent=83 // pred_fallthru
          _
        // Predicated region
        $region93: #{tpu_custom_call.1} parent=83 // pred_check
          %p1927 = pneg %p422
        $region94: #{tpu_custom_call.1} parent=83 // pred_check_branch
          %1929 = sbr.rel (%p1927) target = $region96
        $region95: #{tpu_custom_call.1} parent=83 // pred_region
          %s1931 = ssub.s32 128, 128
          %1932 = vsyncadd [#allocation6], %s1931
          %s1934 = sshll.u32 [#allocation5], 4
          %s1935 = int_to_ptr.vmem [resolvable:$true] %s1934
          %1937 = dma.vmem_to_hbm [thread:$0]  %s1935, 128, %s16, [#allocation6]
        $region96: #{tpu_custom_call.1} parent=83 // pred_fallthru
          _
        // Predicated region
        $region97: #{tpu_custom_call.1} parent=83 // pred_check
          %p1938 = pneg %p422
        $region98: #{tpu_custom_call.1} parent=83 // pred_check_branch
          %1940 = sbr.rel (%p1938) target = $region100
        $region99: #{tpu_custom_call.1} parent=83 // pred_region
          %1941 = dma.done [#allocation6], 128
        $region100: #{tpu_custom_call.1} parent=83 // pred_fallthru
          _
      $region84: #{tpu_custom_call.1} parent=5 // pred_fallthru
        _
      %p1942 = scmp.le.s32.totalorder 2, %s23
      // Predicated region
      $region101: #{tpu_custom_call.1} parent=5 // pred_check
        %p1943 = pneg %p1942
      $region102: #{tpu_custom_call.1} parent=5 // pred_check_branch
        %1945 = sbr.rel (%p1943) target = $region104
      $region103: #{tpu_custom_call.1} parent=5 // pred_region
        %s1946 = ssub.s32 %s23, 2
      $region104: #{tpu_custom_call.1} parent=5 // pred_fallthru
        _
    $region6: #{tpu_custom_call.1} parent=1 // loop_footer
      %s27 = sadd.s32 1, %s23
    $region7: #{tpu_custom_call.1} parent=1 // loop_footer_branch
      %22 = sbr.rel target = $region3
    $region8: #{tpu_custom_call.1} parent=1 // loop_exit
      _
    %1947 = vsyncpa [#allocation6], 1
    %s1948 = scalar_lea.sflag [#allocation6], 1
    %1949 = vsyncpa %s1948, 1

</llo_original>
